<compile_context>
chip_gen: v5e
topology: v5e:2x2
jax: 0.10.0
libtpu: 0.0.40
codegen_flags: <defaults>
</compile_context>

<pallas_src>
import functools

import numpy as np
import jax
import jax.numpy as jnp
from jax.experimental import pallas as pl
from jax.experimental.pallas import tpu as pltpu


IN_TRUE = 100       # true input features
IN_PAD = 128        # lane-aligned input features
HID = 64            # hidden width
OUT_TRUE = 10000    # true output features
OUT_PAD = 10240     # padded w4/b4 width (= 5 * TILE_N)
TILE_N = 2048       # output-column tile (multiple of 128; 5 blocks cover 10000)
MAX_TILE_ROWS = 512


def _round_up(x, m):
    return ((x + m - 1) // m) * m


# ---------------------------------------------------------------------------
# Pallas kernel: fused 4-layer MLP with tanh after every linear layer.
# One grid step computes a (tile_rows, TILE_N) slab of the output.
# ---------------------------------------------------------------------------
def _fcn_mlp_kernel(x_ref,
                    w1_ref, b1_ref,
                    w2_ref, b2_ref,
                    w3_ref, b3_ref,
                    w4_ref, b4_ref,
                    o_ref):
    # x is already bf16 (cast + padded in the wrapper).
    x = x_ref[...]                                                     # (T, 128)
    # Layers 1-3: tiny (64-wide) matmuls; f32 accumulation, f32 bias + tanh.
    h = jnp.tanh(jnp.dot(x, w1_ref[...],
                         preferred_element_type=jnp.float32) + b1_ref[...])
    h = jnp.tanh(jnp.dot(h.astype(jnp.bfloat16), w2_ref[...],
                         preferred_element_type=jnp.float32) + b2_ref[...])
    h = jnp.tanh(jnp.dot(h.astype(jnp.bfloat16), w3_ref[...],
                         preferred_element_type=jnp.float32) + b3_ref[...])
    # Layer 4: (T, 64) x (64, TILE_N) column block; tanh on the EUP slot
    # overlaps the next block's matmul / writeback via the software pipeline.
    o = jnp.tanh(jnp.dot(h.astype(jnp.bfloat16), w4_ref[...],
                         preferred_element_type=jnp.float32) + b4_ref[...])
    o_ref[...] = o.astype(o_ref.dtype)                                 # (T, TILE_N)


def fcn_mlp_pallas(x2d, params):
    """x2d: (N, 100) float.  Returns (N, 10000) f32 (no wrapper-side slicing)."""
    n = x2d.shape[0]
    if n == 0:
        return jnp.zeros((0, OUT_TRUE), jnp.float32)

    # Row tile: big tiles amortize per-step overhead for large N; 16-aligned
    # small tiles avoid wasted compute for tiny N (16 = bf16 sublane packing).
    tile_rows = min(MAX_TILE_ROWS, _round_up(n, 16))
    grid_rows = pl.cdiv(n, tile_rows)          # partial last row block is masked
    grid_cols = OUT_PAD // TILE_N              # 5; covers 10000 (last block partial)

    # bf16 input, features zero-padded 100 -> 128.  This tensor is tiny
    # compared to the (N, 10000) output, so the pad/cast pass is negligible.
    xp = jnp.zeros((n, IN_PAD), jnp.bfloat16).at[:, :IN_TRUE].set(
        x2d.astype(jnp.bfloat16))

    const = lambda j, i: (0, 0)   # resident blocks (same index every step)

    out = pl.pallas_call(
        _fcn_mlp_kernel,
        out_shape=jax.ShapeDtypeStruct((n, OUT_TRUE), jnp.float32),
        grid_spec=pltpu.PrefetchScalarGridSpec(
            num_scalar_prefetch=0,
            # Column axis leading so megacore has >=5 parallel steps even when
            # grid_rows == 1 (small N); rows iterate fastest.
            grid=(grid_cols, grid_rows),
            in_specs=[
                pl.BlockSpec((tile_rows, IN_PAD), lambda j, i: (i, 0)),   # x rows
                pl.BlockSpec((IN_PAD, HID), const),                       # w1
                pl.BlockSpec((1, HID), const),                            # b1
                pl.BlockSpec((HID, HID), const),                          # w2
                pl.BlockSpec((1, HID), const),                            # b2
                pl.BlockSpec((HID, HID), const),                          # w3
                pl.BlockSpec((1, HID), const),                            # b3
                pl.BlockSpec((HID, TILE_N), lambda j, i: (0, j)),         # w4 cols
                pl.BlockSpec((1, TILE_N), lambda j, i: (0, j)),           # b4 cols
            ],
            out_specs=pl.BlockSpec((tile_rows, TILE_N), lambda j, i: (i, j)),
        ),
        compiler_params=pltpu.CompilerParams(
            dimension_semantics=("parallel", "parallel"),
            vmem_limit_bytes=48 << 20,     # ~20 MiB footprint; safe on v5e/v6e/v7x
        ),
    )(xp,
      params["w1"], params["b1"],
      params["w2"], params["b2"],
      params["w3"], params["b3"],
      params["w4"], params["b4"])

    return out


# ---------------------------------------------------------------------------
# Parameter init (PyTorch-Linear-style uniform(-1/sqrt(fan_in), +)).
# Kernel params: weights (in, out) bf16 zero-padded to lane-aligned shapes,
# biases f32 (1, out_padded).  Also returns the unpadded f32 originals for a
# reference check.
# ---------------------------------------------------------------------------
def init_params(key):
    dims = [(IN_TRUE, HID), (HID, HID), (HID, HID), (HID, OUT_TRUE)]
    pads = [(IN_PAD, HID), (HID, HID), (HID, HID), (HID, OUT_PAD)]
    kparams, fparams = {}, {}
    for i, ((fin, fout), (pin, pout)) in enumerate(zip(dims, pads), start=1):
        key, kw, kb = jax.random.split(key, 3)
        bound = 1.0 / np.sqrt(fin)
        w = jax.random.uniform(kw, (fin, fout), jnp.float32,
                               minval=-bound, maxval=bound)
        b = jax.random.uniform(kb, (1, fout), jnp.float32,
                               minval=-bound, maxval=bound)
        fparams[f"w{i}"] = w
        fparams[f"b{i}"] = b
        kparams[f"w{i}"] = (jnp.zeros((pin, pout), jnp.float32)
                            .at[:fin, :fout].set(w).astype(jnp.bfloat16))
        kparams[f"b{i}"] = jnp.zeros((1, pout), jnp.float32).at[:, :fout].set(b)
    return kparams, fparams


# ---------------------------------------------------------------------------
# Forward pass matching FCN.forward semantics.
# ---------------------------------------------------------------------------
@functools.partial(jax.jit, static_argnames=("count",))
def _select_and_mlp(x, params, *, count):
    vals = x[..., 0].reshape(-1)
    mask = x[..., 1].reshape(-1) != 0
    idx = jnp.where(mask, size=count, fill_value=0)[0]     # on-device compaction
    x2d = vals[idx].reshape(-1, IN_TRUE).astype(jnp.float32)
    out2d = fcn_mlp_pallas(x2d, params)                    # (N, 10000)
    return out2d.reshape(-1, IN_TRUE, IN_TRUE)             # metadata-only reshape


def fcn_forward(x, params):
    # x: (B, H, W, 2); channel 0 = values, channel 1 = boolean mask.
    # TODO(synk): the scalar count sync is unavoidable because masked_select
    # has a data-dependent output shape; everything downstream is one jit.
    count = int(jnp.sum(x[..., 1] != 0))
    if count == 0:
        return jnp.zeros((0, IN_TRUE, IN_TRUE), jnp.float32)
    assert count % IN_TRUE == 0, "masked_select count must be a multiple of 100"
    return _select_and_mlp(x, params, count=count)


# Pure NumPy f32 reference (mirrors the PyTorch module).
def fcn_reference_np(x, fparams):
    x = np.asarray(x, np.float32)
    vals = x[..., 0].reshape(-1)
    mask = x[..., 1].reshape(-1) != 0
    h = vals[mask].reshape(-1, IN_TRUE)
    for i in range(1, 5):
        w = np.asarray(fparams[f"w{i}"], np.float32)
        b = np.asarray(fparams[f"b{i}"], np.float32)
        h = np.tanh(h @ w + b)
    return h.reshape(-1, IN_TRUE, IN_TRUE)


if __name__ == "__main__":
    key = jax.random.PRNGKey(0)
    kp, kx = jax.random.split(key)
    kparams, fparams = init_params(kp)

    # Small input consistent with the forward: (B=2, 10, 10, 2).
    # Channel 1 (mask) all ones -> 200 selected elements -> 2 rows of 100.
    B, H, W = 2, 10, 10
    values = jax.random.normal(kx, (B, H, W), jnp.float32)
    mask = jnp.ones((B, H, W), jnp.float32)
    x = jnp.stack([values, mask], axis=-1)      # (2, 10, 10, 2)

    out = fcn_forward(x, kparams)
    out = jax.block_until_ready(out)

    assert out.shape == (2, 100, 100), out.shape
    assert bool(jnp.all(jnp.isfinite(out)))
    assert bool(jnp.all(jnp.abs(out) <= 1.0))   # tanh output range

    ref = fcn_reference_np(x, fparams)
    max_err = float(np.max(np.abs(np.asarray(out, np.float32) - ref)))
    assert max_err < 5e-2, f"max abs err vs f32 reference = {max_err}"

    print("KERNEL_OK")
</pallas_src>

<mosaic_0001>
module attributes {stable_mosaic.version = 11 : i64} {
  func.func @_fcn_mlp_kernel(%arg0: i32, %arg1: i32, %arg2: memref<16x128xbf16, #tpu.memory_space<vmem>>, %arg3: memref<128x64xbf16, #tpu.memory_space<vmem>>, %arg4: memref<1x64xf32, #tpu.memory_space<vmem>>, %arg5: memref<64x64xbf16, #tpu.memory_space<vmem>>, %arg6: memref<1x64xf32, #tpu.memory_space<vmem>>, %arg7: memref<64x64xbf16, #tpu.memory_space<vmem>>, %arg8: memref<1x64xf32, #tpu.memory_space<vmem>>, %arg9: memref<64x2048xbf16, #tpu.memory_space<vmem>>, %arg10: memref<1x2048xf32, #tpu.memory_space<vmem>>, %arg11: memref<16x2048xf32, #tpu.memory_space<vmem>>) attributes {dimension_semantics = [#tpu.dimension_semantics<parallel>, #tpu.dimension_semantics<parallel>], iteration_bounds = array<i64: 5, 1>, scalar_prefetch = 0 : i64, scratch_operands = 0 : i64, tpu.core_type = #tpu.core_type<tc>, window_params = [{transform_indices = @transform_0, window_bounds = array<i64: 16, 128>}, {pipeline_mode = #tpu.pipeline_mode<synchronous>, transform_indices = @transform_1, window_bounds = array<i64: 128, 64>}, {pipeline_mode = #tpu.pipeline_mode<synchronous>, transform_indices = @transform_2, window_bounds = array<i64: 1, 64>}, {pipeline_mode = #tpu.pipeline_mode<synchronous>, transform_indices = @transform_3, window_bounds = array<i64: 64, 64>}, {pipeline_mode = #tpu.pipeline_mode<synchronous>, transform_indices = @transform_4, window_bounds = array<i64: 1, 64>}, {pipeline_mode = #tpu.pipeline_mode<synchronous>, transform_indices = @transform_5, window_bounds = array<i64: 64, 64>}, {pipeline_mode = #tpu.pipeline_mode<synchronous>, transform_indices = @transform_6, window_bounds = array<i64: 1, 64>}, {transform_indices = @transform_7, window_bounds = array<i64: 64, 2048>}, {transform_indices = @transform_8, window_bounds = array<i64: 1, 2048>}, {transform_indices = @transform_9, window_bounds = array<i64: 16, 2048>}]} {
    %c0 = arith.constant 0 : index
    %c0_0 = arith.constant 0 : index
    %0 = vector.load %arg2[%c0, %c0_0] : memref<16x128xbf16, #tpu.memory_space<vmem>>, vector<16x128xbf16>
    %c0_1 = arith.constant 0 : index
    %c0_2 = arith.constant 0 : index
    %1 = vector.load %arg3[%c0_1, %c0_2] : memref<128x64xbf16, #tpu.memory_space<vmem>>, vector<128x64xbf16>
    %cst = arith.constant dense<0.000000e+00> : vector<16x64xf32>
    %2 = tpu.matmul %0, %1, %cst {dimension_numbers = #tpu.dot_dimension_numbers<[1], [0], [0], [1], [0, 0, 1, 1], [], []>} : vector<16x128xbf16>, vector<128x64xbf16>, vector<16x64xf32> -> vector<16x64xf32>
    %c0_3 = arith.constant 0 : index
    %c0_4 = arith.constant 0 : index
    %3 = vector.load %arg4[%c0_3, %c0_4] : memref<1x64xf32, #tpu.memory_space<vmem>>, vector<1x64xf32>
    %4 = vector.broadcast %3 : vector<1x64xf32> to vector<16x64xf32>
    %5 = arith.addf %2, %4 : vector<16x64xf32>
    %6 = math.tanh %5 : vector<16x64xf32>
    %7 = arith.truncf %6 : vector<16x64xf32> to vector<16x64xbf16>
    %c0_5 = arith.constant 0 : index
    %c0_6 = arith.constant 0 : index
    %8 = vector.load %arg5[%c0_5, %c0_6] : memref<64x64xbf16, #tpu.memory_space<vmem>>, vector<64x64xbf16>
    %cst_7 = arith.constant dense<0.000000e+00> : vector<16x64xf32>
    %9 = tpu.matmul %7, %8, %cst_7 {dimension_numbers = #tpu.dot_dimension_numbers<[1], [0], [0], [1], [0, 0, 1, 1], [], []>} : vector<16x64xbf16>, vector<64x64xbf16>, vector<16x64xf32> -> vector<16x64xf32>
    %c0_8 = arith.constant 0 : index
    %c0_9 = arith.constant 0 : index
    %10 = vector.load %arg6[%c0_8, %c0_9] : memref<1x64xf32, #tpu.memory_space<vmem>>, vector<1x64xf32>
    %11 = vector.broadcast %10 : vector<1x64xf32> to vector<16x64xf32>
    %12 = arith.addf %9, %11 : vector<16x64xf32>
    %13 = math.tanh %12 : vector<16x64xf32>
    %14 = arith.truncf %13 : vector<16x64xf32> to vector<16x64xbf16>
    %c0_10 = arith.constant 0 : index
    %c0_11 = arith.constant 0 : index
    %15 = vector.load %arg7[%c0_10, %c0_11] : memref<64x64xbf16, #tpu.memory_space<vmem>>, vector<64x64xbf16>
    %cst_12 = arith.constant dense<0.000000e+00> : vector<16x64xf32>
    %16 = tpu.matmul %14, %15, %cst_12 {dimension_numbers = #tpu.dot_dimension_numbers<[1], [0], [0], [1], [0, 0, 1, 1], [], []>} : vector<16x64xbf16>, vector<64x64xbf16>, vector<16x64xf32> -> vector<16x64xf32>
    %c0_13 = arith.constant 0 : index
    %c0_14 = arith.constant 0 : index
    %17 = vector.load %arg8[%c0_13, %c0_14] : memref<1x64xf32, #tpu.memory_space<vmem>>, vector<1x64xf32>
    %18 = vector.broadcast %17 : vector<1x64xf32> to vector<16x64xf32>
    %19 = arith.addf %16, %18 : vector<16x64xf32>
    %20 = math.tanh %19 : vector<16x64xf32>
    %21 = arith.truncf %20 : vector<16x64xf32> to vector<16x64xbf16>
    %c0_15 = arith.constant 0 : index
    %c0_16 = arith.constant 0 : index
    %22 = vector.load %arg9[%c0_15, %c0_16] : memref<64x2048xbf16, #tpu.memory_space<vmem>>, vector<64x2048xbf16>
    %cst_17 = arith.constant dense<0.000000e+00> : vector<16x2048xf32>
    %23 = tpu.matmul %21, %22, %cst_17 {dimension_numbers = #tpu.dot_dimension_numbers<[1], [0], [0], [1], [0, 0, 1, 1], [], []>} : vector<16x64xbf16>, vector<64x2048xbf16>, vector<16x2048xf32> -> vector<16x2048xf32>
    %c0_18 = arith.constant 0 : index
    %c0_19 = arith.constant 0 : index
    %24 = vector.load %arg10[%c0_18, %c0_19] : memref<1x2048xf32, #tpu.memory_space<vmem>>, vector<1x2048xf32>
    %25 = vector.broadcast %24 : vector<1x2048xf32> to vector<16x2048xf32>
    %26 = arith.addf %23, %25 : vector<16x2048xf32>
    %27 = math.tanh %26 : vector<16x2048xf32>
    %c0_20 = arith.constant 0 : index
    %c0_21 = arith.constant 0 : index
    %28 = vector.load %arg11[%c0_20, %c0_21] : memref<16x2048xf32, #tpu.memory_space<vmem>>, vector<16x2048xf32>
    tpu.vector_store %arg11[%c0_20, %c0_21], %27 {strides = array<i32>} : memref<16x2048xf32, #tpu.memory_space<vmem>>, vector<16x2048xf32>,
    return
  }
  func.func @transform_0(%arg0: i32, %arg1: i32) -> (i32, i32) {
    %c0_i32 = arith.constant 0 : i32
    %c0_i32_0 = arith.constant 0 : i32
    return %arg1, %c0_i32 : i32, i32
  }
  func.func @transform_1(%arg0: i32, %arg1: i32) -> (i32, i32) {
    %c0_i32 = arith.constant 0 : i32
    %c0_i32_0 = arith.constant 0 : i32
    %c0_i32_1 = arith.constant 0 : i32
    return %c0_i32, %c0_i32_0 : i32, i32
  }
  func.func @transform_2(%arg0: i32, %arg1: i32) -> (i32, i32) {
    %c0_i32 = arith.constant 0 : i32
    %c0_i32_0 = arith.constant 0 : i32
    %c0_i32_1 = arith.constant 0 : i32
    return %c0_i32, %c0_i32_0 : i32, i32
  }
  func.func @transform_3(%arg0: i32, %arg1: i32) -> (i32, i32) {
    %c0_i32 = arith.constant 0 : i32
    %c0_i32_0 = arith.constant 0 : i32
    %c0_i32_1 = arith.constant 0 : i32
    return %c0_i32, %c0_i32_0 : i32, i32
  }
  func.func @transform_4(%arg0: i32, %arg1: i32) -> (i32, i32) {
    %c0_i32 = arith.constant 0 : i32
    %c0_i32_0 = arith.constant 0 : i32
    %c0_i32_1 = arith.constant 0 : i32
    return %c0_i32, %c0_i32_0 : i32, i32
  }
  func.func @transform_5(%arg0: i32, %arg1: i32) -> (i32, i32) {
    %c0_i32 = arith.constant 0 : i32
    %c0_i32_0 = arith.constant 0 : i32
    %c0_i32_1 = arith.constant 0 : i32
    return %c0_i32, %c0_i32_0 : i32, i32
  }
  func.func @transform_6(%arg0: i32, %arg1: i32) -> (i32, i32) {
    %c0_i32 = arith.constant 0 : i32
    %c0_i32_0 = arith.constant 0 : i32
    %c0_i32_1 = arith.constant 0 : i32
    return %c0_i32, %c0_i32_0 : i32, i32
  }
  func.func @transform_7(%arg0: i32, %arg1: i32) -> (i32, i32) {
    %c0_i32 = arith.constant 0 : i32
    %c0_i32_0 = arith.constant 0 : i32
    return %c0_i32, %arg0 : i32, i32
  }
  func.func @transform_8(%arg0: i32, %arg1: i32) -> (i32, i32) {
    %c0_i32 = arith.constant 0 : i32
    %c0_i32_0 = arith.constant 0 : i32
    return %c0_i32, %arg0 : i32, i32
  }
  func.func @transform_9(%arg0: i32, %arg1: i32) -> (i32, i32) {
    %c0_i32 = arith.constant 0 : i32
    return %arg1, %arg0 : i32, i32
  }
}

</mosaic_0001>

<llo_original>
// kernel: squeeze.2
$region0: #{squeeze.2}
  %s0 = inlined_call_operand.vmem [shape: bf16[2,10,10], index: 0, kind: input, shape index: {}]
  %s1 = inlined_call_operand.vmem [shape: bf16[200], index: 1, kind: output, shape index: {}]
  $region1: #{squeeze.2} parent=0
    #allocation0 [shape = 'u8[4096]{0}', space=vmem, size = 0x1000, scoped, tag = 'scoped mem for output reshape']
    #allocation1 [shape = 'u8[16384]{0}', space=vmem, size = 0x4000, scoped, tag = 'scoped mem for input reshape']
    %s3 = ssub.s32 256, 1
    %s4 = scalar_lea.vmem %s0, 12
    %s5 = sshrl.u32 %s3, 1
    %s6 = sor.u32 %s3, %s5
    %s7 = sand.u32 %s6, 85
    %s8 = sshrl.u32 %s7, 1
    %s9 = sor.u32 %s7, %s8
    %s10 = sand.u32 51, %s9
    %s11 = sshrl.u32 %s10, 2
    %s12 = sor.u32 %s10, %s11
    %s13 = sand.u32 15, %s12
    %v14 = vld [vmem:[%s4] sm:%s13]
    %v15 = vunpack.c.l.bf16 %v14
    %v16 = vunpack.c.h.bf16 %v14
    %s17 = scalar_lea.vmem [#allocation1], 24
    %18 = vst [vmem:[%s17] sm:%s3] %v15
    %s19 = scalar_lea.vmem %s0, 8
    %s20 = sshrl.u32 %s3, 1
    %s21 = sor.u32 %s3, %s20
    %s22 = sand.u32 %s21, 85
    %s23 = sshrl.u32 %s22, 1
    %s24 = sor.u32 %s22, %s23
    %s25 = sand.u32 51, %s24
    %s26 = sshrl.u32 %s25, 2
    %s27 = sor.u32 %s25, %s26
    %s28 = sand.u32 15, %s27
    %v29 = vld [vmem:[%s19] sm:%s28]
    %v30 = vunpack.c.l.bf16 %v29
    %v31 = vunpack.c.h.bf16 %v29
    %s32 = scalar_lea.vmem [#allocation1], 16
    %33 = vst [vmem:[%s32] sm:%s3] %v30
    %s34 = scalar_lea.vmem %s0, 4
    %s35 = sshrl.u32 %s3, 1
    %s36 = sor.u32 %s3, %s35
    %s37 = sand.u32 %s36, 85
    %s38 = sshrl.u32 %s37, 1
    %s39 = sor.u32 %s37, %s38
    %s40 = sand.u32 51, %s39
    %s41 = sshrl.u32 %s40, 2
    %s42 = sor.u32 %s40, %s41
    %s43 = sand.u32 15, %s42
    %v44 = vld [vmem:[%s34] sm:%s43]
    %v45 = vunpack.c.l.bf16 %v44
    %v46 = vunpack.c.h.bf16 %v44
    %s47 = scalar_lea.vmem [#allocation1], 8
    %48 = vst [vmem:[%s47] sm:%s3] %v45
    %s49 = sshrl.u32 %s3, 1
    %s50 = sor.u32 %s3, %s49
    %s51 = sand.u32 %s50, 85
    %s52 = sshrl.u32 %s51, 1
    %s53 = sor.u32 %s51, %s52
    %s54 = sand.u32 51, %s53
    %s55 = sshrl.u32 %s54, 2
    %s56 = sor.u32 %s54, %s55
    %s57 = sand.u32 15, %s56
    %v58 = vld [vmem:[%s0] sm:%s57]
    %v59 = vunpack.c.l.bf16 %v58
    %v60 = vunpack.c.h.bf16 %v58
    %61 = vst [vmem:[#allocation1] sm:%s3] %v59
    %v62 = vld [vmem:[#allocation1] sm:$0x1]
    %vm63 = vcmask 80896
    %64 = vst.msk [vmem:[#allocation0] sm:$0x1] %vm63, %v62
    %s65 = scalar_lea.vmem [#allocation1], 18
    %v66 = vld [vmem:[%s65] sm:$0x1]
    %s67 = scalar_lea.vmem [#allocation1], 18
    %v68 = vld [vmem:[%s67] sm:$0x1]
    %vm69 = vcmask 64512
    %v70 = vsel %vm69, %v68, %v66
    %71 = vrot.lane.b32.xlu0 %v70, 120
    %v72 = vpop.permute.xlu0 %71
    %vm73 = vcmask 15360
    %s74 = scalar_lea.vmem [#allocation0], 1
    %75 = vst.msk [vmem:[%s74] sm:$0x1] %vm73, %v72
    %vm76 = vcmask 1048512
    %77 = vst.msk [vmem:[#allocation0] sm:$0x1] %vm76, %v72
    %s78 = scalar_lea.vmem [#allocation1], 17
    %v79 = vld [vmem:[%s78] sm:$0x1]
    %80 = vrot.lane.b32.xlu0 %v79, 110
    %v81 = vpop.permute.xlu0 %80
    %vm82 = vcmask 982896
    %83 = vst.msk [vmem:[#allocation0] sm:$0x1] %vm82, %v81
    %s84 = scalar_lea.vmem [#allocation1], 16
    %v85 = vld [vmem:[%s84] sm:$0x1]
    %86 = vrot.lane.b32.xlu0 %v85, 100
    %v87 = vpop.permute.xlu0 %86
    %vm88 = vcmask 900896
    %89 = vst.msk [vmem:[#allocation0] sm:$0x1] %vm88, %v87
    %s90 = scalar_lea.vmem [#allocation1], 9
    %v91 = vld [vmem:[%s90] sm:$0x1]
    %92 = vrot.lane.b32.xlu0 %v91, 90
    %v93 = vpop.permute.xlu0 %92
    %vm94 = vcmask 818896
    %95 = vst.msk [vmem:[#allocation0] sm:$0x1] %vm94, %v93
    %s96 = scalar_lea.vmem [#allocation1], 8
    %v97 = vld [vmem:[%s96] sm:$0x1]
    %98 = vrot.lane.b32.xlu0 %v97, 80
    %v99 = vpop.permute.xlu0 %98
    %vm100 = vcmask 736896
    %101 = vst.msk [vmem:[#allocation0] sm:$0x1] %vm100, %v99
    %s102 = scalar_lea.vmem [#allocation1], 7
    %v103 = vld [vmem:[%s102] sm:$0x1]
    %104 = vrot.lane.b32.xlu0 %v103, 70
    %v105 = vpop.permute.xlu0 %104
    %vm106 = vcmask 654896
    %107 = vst.msk [vmem:[#allocation0] sm:$0x1] %vm106, %v105
    %s108 = scalar_lea.vmem [#allocation1], 25
    %v109 = vld [vmem:[%s108] sm:$0x1]
    %110 = vrot.lane.b32.xlu0 %v109, 62
    %v111 = vpop.permute.xlu0 %110
    %vm112 = vcmask 589296
    %s113 = scalar_lea.vmem [#allocation0], 1
    %114 = vst.msk [vmem:[%s113] sm:$0x1] %vm112, %v111
    %s115 = scalar_lea.vmem [#allocation1], 6
    %v116 = vld [vmem:[%s115] sm:$0x1]
    %117 = vrot.lane.b32.xlu0 %v116, 60
    %v118 = vpop.permute.xlu0 %117
    %vm119 = vcmask 572896
    %120 = vst.msk [vmem:[#allocation0] sm:$0x1] %vm119, %v118
    %s121 = scalar_lea.vmem [#allocation1], 24
    %v122 = vld [vmem:[%s121] sm:$0x1]
    %123 = vrot.lane.b32.xlu0 %v122, 52
    %v124 = vpop.permute.xlu0 %123
    %vm125 = vcmask 507296
    %s126 = scalar_lea.vmem [#allocation0], 1
    %127 = vst.msk [vmem:[%s126] sm:$0x1] %vm125, %v124
    %s128 = scalar_lea.vmem [#allocation1], 5
    %v129 = vld [vmem:[%s128] sm:$0x1]
    %130 = vrot.lane.b32.xlu0 %v129, 50
    %v131 = vpop.permute.xlu0 %130
    %vm132 = vcmask 490896
    %133 = vst.msk [vmem:[#allocation0] sm:$0x1] %vm132, %v131
    %s134 = scalar_lea.vmem [#allocation1], 23
    %v135 = vld [vmem:[%s134] sm:$0x1]
    %136 = vrot.lane.b32.xlu0 %v135, 42
    %v137 = vpop.permute.xlu0 %136
    %vm138 = vcmask 425296
    %s139 = scalar_lea.vmem [#allocation0], 1
    %140 = vst.msk [vmem:[%s139] sm:$0x1] %vm138, %v137
    %s141 = scalar_lea.vmem [#allocation1], 4
    %v142 = vld [vmem:[%s141] sm:$0x1]
    %143 = vrot.lane.b32.xlu0 %v142, 40
    %v144 = vpop.permute.xlu0 %143
    %vm145 = vcmask 408896
    %146 = vst.msk [vmem:[#allocation0] sm:$0x1] %vm145, %v144
    %s147 = scalar_lea.vmem [#allocation1], 22
    %v148 = vld [vmem:[%s147] sm:$0x1]
    %149 = vrot.lane.b32.xlu0 %v148, 32
    %v150 = vpop.permute.xlu0 %149
    %vm151 = vcmask 343296
    %s152 = scalar_lea.vmem [#allocation0], 1
    %153 = vst.msk [vmem:[%s152] sm:$0x1] %vm151, %v150
    %s154 = scalar_lea.vmem [#allocation1], 3
    %v155 = vld [vmem:[%s154] sm:$0x1]
    %156 = vrot.lane.b32.xlu0 %v155, 30
    %v157 = vpop.permute.xlu0 %156
    %vm158 = vcmask 326896
    %159 = vst.msk [vmem:[#allocation0] sm:$0x1] %vm158, %v157
    %s160 = scalar_lea.vmem [#allocation1], 21
    %v161 = vld [vmem:[%s160] sm:$0x1]
    %162 = vrot.lane.b32.xlu0 %v161, 22
    %v163 = vpop.permute.xlu0 %162
    %vm164 = vcmask 261296
    %s165 = scalar_lea.vmem [#allocation0], 1
    %166 = vst.msk [vmem:[%s165] sm:$0x1] %vm164, %v163
    %s167 = scalar_lea.vmem [#allocation1], 2
    %v168 = vld [vmem:[%s167] sm:$0x1]
    %169 = vrot.lane.b32.xlu0 %v168, 20
    %v170 = vpop.permute.xlu0 %169
    %vm171 = vcmask 244896
    %172 = vst.msk [vmem:[#allocation0] sm:$0x1] %vm171, %v170
    %s173 = scalar_lea.vmem [#allocation1], 20
    %v174 = vld [vmem:[%s173] sm:$0x1]
    %175 = vrot.lane.b32.xlu0 %v174, 12
    %v176 = vpop.permute.xlu0 %175
    %vm177 = vcmask 179296
    %s178 = scalar_lea.vmem [#allocation0], 1
    %179 = vst.msk [vmem:[%s178] sm:$0x1] %vm177, %v176
    %s180 = scalar_lea.vmem [#allocation1], 1
    %v181 = vld [vmem:[%s180] sm:$0x1]
    %182 = vrot.lane.b32.xlu0 %v181, 10
    %v183 = vpop.permute.xlu0 %182
    %vm184 = vcmask 162896
    %185 = vst.msk [vmem:[#allocation0] sm:$0x1] %vm184, %v183
    %s186 = scalar_lea.vmem [#allocation1], 19
    %v187 = vld [vmem:[%s186] sm:$0x1]
    %188 = vrot.lane.b32.xlu0 %v187, 2
    %v189 = vpop.permute.xlu0 %188
    %vm190 = vcmask 97296
    %s191 = scalar_lea.vmem [#allocation0], 1
    %192 = vst.msk [vmem:[%s191] sm:$0x1] %vm190, %v189
    %s194 = ssub.s32 4, 1
    %v195 = vld [vmem:[#allocation0] sm:%s194]
    %v196 = vpack.c.bf16 0.0, %v195
    %s198 = ssub.s32 2, 1
    %199 = vst [vmem:[%s1] sm:%s198] %v196

// kernel: _select_and_mlp.1
$region0: #{_select_and_mlp.1}
  #allocation0 [shape = 'u32[]', space=smem, size = 0x4, offset = 0x4, fixed_abs, tag = 'smem constant byte address 0x4 - core index']
  #allocation1 [shape = 'u32[72,128]{1,0:T(1,128)}', space=vmem, size = 0x9000, scoped, tag = 'internal scratch']
  %s0 = inlined_call_operand.vmem [shape: bf16[2,128], index: 0, kind: input, shape index: {}]
  %s1 = inlined_call_operand.vmem [shape: bf16[128,64], index: 1, kind: input, shape index: {}]
  %s2 = inlined_call_operand.hbm [shape: f32[1,64], index: 2, kind: input, shape index: {}]
  %s3 = inlined_call_operand.hbm [shape: bf16[64,64], index: 3, kind: input, shape index: {}]
  %s4 = inlined_call_operand.hbm [shape: f32[1,64], index: 4, kind: input, shape index: {}]
  %s5 = inlined_call_operand.hbm [shape: bf16[64,64], index: 5, kind: input, shape index: {}]
  %s6 = inlined_call_operand.hbm [shape: f32[1,64], index: 6, kind: input, shape index: {}]
  %s7 = inlined_call_operand.hbm [shape: bf16[64,10240], index: 7, kind: input, shape index: {}]
  %s8 = inlined_call_operand.hbm [shape: f32[1,10240], index: 8, kind: input, shape index: {}]
  %s9 = inlined_call_operand.vmem [shape: f32[2,10000], index: 9, kind: output, shape index: {}]
  %s10 = sld [smem:[#allocation0]]
  $region159: #{_select_and_mlp.1} parent=0
    _
  %s12 = ssub.s32 1, %s10
  %s13 = scalar_select 0, %s12, %s10
  $region1: #{_select_and_mlp.1} parent=0
    #allocation2 [shape = 'u8[512]{0}', space=vmem, size = 0x400, scoped, tag = 'input window, operand 2, single buffered']
    #allocation3 [shape = 's32[2]{0}', space=sflag, size = 0x8, scoped, tag = 'scoped memory for _select_and_mlp.1']
    #allocation4 [shape = 'u8[16384]{0}', space=vmem, size = 0x4000, scoped, tag = 'input window, operand 3, single buffered']
    #allocation5 [shape = 's32[1]{0}', space=sflag, size = 0x4, scoped, tag = 'scoped memory for _select_and_mlp.1']
    #allocation6 [shape = 'u8[512]{0}', space=vmem, size = 0x400, scoped, tag = 'input window, operand 4, single buffered']
    #allocation7 [shape = 'u8[16384]{0}', space=vmem, size = 0x4000, scoped, tag = 'input window, operand 5, single buffered']
    #allocation8 [shape = 's32[1]{0}', space=sflag, size = 0x4, scoped, tag = 'scoped memory for _select_and_mlp.1']
    #allocation9 [shape = 'u8[512]{0}', space=vmem, size = 0x400, scoped, tag = 'input window, operand 6, single buffered']
    #allocation10 [shape = 'u8[524288]{0}', space=vmem, size = 0x80000, scoped, tag = 'input window, operand 7']
    #allocation11 [shape = 's32[2]{0}', space=sflag, size = 0x8, scoped, tag = 'scoped memory for _select_and_mlp.1']
    #allocation12 [shape = 'u8[16384]{0}', space=vmem, size = 0x4000, scoped, tag = 'input window, operand 8']
    #allocation13 [shape = 'u8[262144]{0}', space=vmem, size = 0x40000, scoped, tag = 'output window, operand 0']
    %14 = vsyncpa [#allocation3], 0
    %15 = vsyncpa [#allocation5], 0
    %16 = vsyncpa [#allocation8], 0
    %17 = vsyncpa [#allocation11], 0
    %s18 = scalar_lea.sflag [#allocation11], 1
    %19 = vsyncpa %s18, 0
    loop: start=0, step=1, limit=7
    $region2: #{_select_and_mlp.1} parent=1 // loop_pre_header
      _
    $region3: #{_select_and_mlp.1} parent=1 // loop_header
      %s21 = sphi 0, %s25
      %p22 = scmp.ge.s32.totalorder %s21, 7
      %s28 = sphi 0, %s40
      %s29 = sphi 0, %s36
      %s30 = sphi 0, %s28
      %s31 = sphi 0, %s29
      %s32 = sphi 0, %s30
      %s33 = sphi 0, %s31
      %s43 = sphi 0, %s45
      %s46 = sphi 0, %s43
      %s47 = sphi 0, %s46
      %s63 = sphi 0, %s47
      %s67 = sphi 0, %s67
      %s69 = sphi 0, %s67
      %s70 = sphi 0, %s69
      %s84 = sphi 0, %s70
      %s88 = sphi 0, %s88
      %s90 = sphi 0, %s88
      %s91 = sphi 0, %s90
      %s105 = sphi 0, %s91
      %s109 = sphi 0, %s109
      %s111 = sphi 0, %s109
      %s112 = sphi 0, %s111
      %s126 = sphi 0, %s112
      %s130 = sphi 0, %s130
      %s132 = sphi 0, %s130
      %s133 = sphi 0, %s132
      %s147 = sphi 0, %s133
      %s151 = sphi 0, %s151
      %s153 = sphi 0, %s151
      %s154 = sphi 0, %s153
      %s168 = sphi 0, %s154
      %s172 = sphi 0, %s172
      %s174 = sphi 0, %s172
      %s175 = sphi 0, %s174
      %s189 = sphi 0, %s175
      %s195 = sphi 0, %s197
      %s198 = sphi 0, %s195
      %s199 = sphi 0, %s198
      %s215 = sphi 0, %s199
      %s221 = sphi 0, %s223
      %s224 = sphi 0, %s221
      %s225 = sphi 0, %s224
      %s241 = sphi 0, %s225
      %s249 = sphi 0, %s251
      %s252 = sphi 0, %s249
      %s253 = sphi 0, %s252
      %s269 = sphi 0, %s253
    $region4: #{_select_and_mlp.1} parent=1 // loop_header_branch
      %24 = sbr.rel (%p22) target = $region8
    $region5: #{_select_and_mlp.1} parent=1 // loop_body
      %s26 = ssub.s32 %s21, 1
      %s27 = ssub.s32 %s21, 2
      %s34 = sadd.s32 1, %s29
      %p35 = scmp.ge.s32.totalorder %s34, 1
      %s36 = scalar_select %p35, 0, %s34
      %s37 = sadd.s32 1, %s28
      %s38 = scalar_select %p35, %s37, %s28
      %p39 = scmp.ge.s32.totalorder %s38, 5
      %s40 = scalar_select %p39, 0, %s38
      %s41 = ssub.s32 %s29, %s36
      %p42 = scmp.eq.s32.totalorder %s41, 0
      %s44 = sadd.s32 %s43, 1
      %s45 = scalar_select %p42, %s43, %s44
      %p48 = pneg %p42
      %p49 = scmp.eq.s32.totalorder %s21, 4
      %p50 = por %p48, %p49
      %p51 = scmp.ne.s32.totalorder %s43, %s46
      %p52 = scmp.eq.s32.totalorder %s21, 0
      %p53 = por %p51, %p52
      %p54 = scmp.ne.s32.totalorder %s43, %s46
      %p55 = scmp.eq.s32.totalorder %s26, 4
      %p56 = por %p54, %p55
      %p57 = scmp.ne.s32.totalorder %s46, %s47
      %p58 = scmp.eq.s32.totalorder %s26, 0
      %p59 = por %p57, %p58
      %p60 = scmp.ne.s32.totalorder %s46, %s47
      %p61 = scmp.eq.s32.totalorder %s27, 4
      %p62 = por %p60, %p61
      %p64 = scmp.ne.s32.totalorder %s47, %s63
      %p65 = scmp.eq.s32.totalorder %s27, 0
      %p66 = por %p64, %p65
      %s68 = sadd.s32 %s67, 1
      %p71 = scmp.eq.s32.totalorder %s21, 4
      %p72 = scmp.ne.s32.totalorder %s67, %s69
      %p73 = scmp.eq.s32.totalorder %s21, 0
      %p74 = por %p72, %p73
      %p75 = scmp.ne.s32.totalorder %s67, %s69
      %p76 = scmp.eq.s32.totalorder %s26, 4
      %p77 = por %p75, %p76
      %p78 = scmp.ne.s32.totalorder %s69, %s70
      %p79 = scmp.eq.s32.totalorder %s26, 0
      %p80 = por %p78, %p79
      %p81 = scmp.ne.s32.totalorder %s69, %s70
      %p82 = scmp.eq.s32.totalorder %s27, 4
      %p83 = por %p81, %p82
      %p85 = scmp.ne.s32.totalorder %s70, %s84
      %p86 = scmp.eq.s32.totalorder %s27, 0
      %p87 = por %p85, %p86
      %s89 = sadd.s32 %s88, 1
      %p92 = scmp.eq.s32.totalorder %s21, 4
      %p93 = scmp.ne.s32.totalorder %s88, %s90
      %p94 = scmp.eq.s32.totalorder %s21, 0
      %p95 = por %p93, %p94
      %p96 = scmp.ne.s32.totalorder %s88, %s90
      %p97 = scmp.eq.s32.totalorder %s26, 4
      %p98 = por %p96, %p97
      %p99 = scmp.ne.s32.totalorder %s90, %s91
      %p100 = scmp.eq.s32.totalorder %s26, 0
      %p101 = por %p99, %p100
      %p102 = scmp.ne.s32.totalorder %s90, %s91
      %p103 = scmp.eq.s32.totalorder %s27, 4
      %p104 = por %p102, %p103
      %p106 = scmp.ne.s32.totalorder %s91, %s105
      %p107 = scmp.eq.s32.totalorder %s27, 0
      %p108 = por %p106, %p107
      %s110 = sadd.s32 %s109, 1
      %p113 = scmp.eq.s32.totalorder %s21, 4
      %p114 = scmp.ne.s32.totalorder %s109, %s111
      %p115 = scmp.eq.s32.totalorder %s21, 0
      %p116 = por %p114, %p115
      %p117 = scmp.ne.s32.totalorder %s109, %s111
      %p118 = scmp.eq.s32.totalorder %s26, 4
      %p119 = por %p117, %p118
      %p120 = scmp.ne.s32.totalorder %s111, %s112
      %p121 = scmp.eq.s32.totalorder %s26, 0
      %p122 = por %p120, %p121
      %p123 = scmp.ne.s32.totalorder %s111, %s112
      %p124 = scmp.eq.s32.totalorder %s27, 4
      %p125 = por %p123, %p124
      %p127 = scmp.ne.s32.totalorder %s112, %s126
      %p128 = scmp.eq.s32.totalorder %s27, 0
      %p129 = por %p127, %p128
      %s131 = sadd.s32 %s130, 1
      %p134 = scmp.eq.s32.totalorder %s21, 4
      %p135 = scmp.ne.s32.totalorder %s130, %s132
      %p136 = scmp.eq.s32.totalorder %s21, 0
      %p137 = por %p135, %p136
      %p138 = scmp.ne.s32.totalorder %s130, %s132
      %p139 = scmp.eq.s32.totalorder %s26, 4
      %p140 = por %p138, %p139
      %p141 = scmp.ne.s32.totalorder %s132, %s133
      %p142 = scmp.eq.s32.totalorder %s26, 0
      %p143 = por %p141, %p142
      %p144 = scmp.ne.s32.totalorder %s132, %s133
      %p145 = scmp.eq.s32.totalorder %s27, 4
      %p146 = por %p144, %p145
      %p148 = scmp.ne.s32.totalorder %s133, %s147
      %p149 = scmp.eq.s32.totalorder %s27, 0
      %p150 = por %p148, %p149
      %s152 = sadd.s32 %s151, 1
      %p155 = scmp.eq.s32.totalorder %s21, 4
      %p156 = scmp.ne.s32.totalorder %s151, %s153
      %p157 = scmp.eq.s32.totalorder %s21, 0
      %p158 = por %p156, %p157
      %p159 = scmp.ne.s32.totalorder %s151, %s153
      %p160 = scmp.eq.s32.totalorder %s26, 4
      %p161 = por %p159, %p160
      %p162 = scmp.ne.s32.totalorder %s153, %s154
      %p163 = scmp.eq.s32.totalorder %s26, 0
      %p164 = por %p162, %p163
      %p165 = scmp.ne.s32.totalorder %s153, %s154
      %p166 = scmp.eq.s32.totalorder %s27, 4
      %p167 = por %p165, %p166
      %p169 = scmp.ne.s32.totalorder %s154, %s168
      %p170 = scmp.eq.s32.totalorder %s27, 0
      %p171 = por %p169, %p170
      %s173 = sadd.s32 %s172, 1
      %p176 = scmp.eq.s32.totalorder %s21, 4
      %p177 = scmp.ne.s32.totalorder %s172, %s174
      %p178 = scmp.eq.s32.totalorder %s21, 0
      %p179 = por %p177, %p178
      %p180 = scmp.ne.s32.totalorder %s172, %s174
      %p181 = scmp.eq.s32.totalorder %s26, 4
      %p182 = por %p180, %p181
      %p183 = scmp.ne.s32.totalorder %s174, %s175
      %p184 = scmp.eq.s32.totalorder %s26, 0
      %p185 = por %p183, %p184
      %p186 = scmp.ne.s32.totalorder %s174, %s175
      %p187 = scmp.eq.s32.totalorder %s27, 4
      %p188 = por %p186, %p187
      %p190 = scmp.ne.s32.totalorder %s175, %s189
      %p191 = scmp.eq.s32.totalorder %s27, 0
      %p192 = por %p190, %p191
      %s193 = ssub.s32 %s28, %s40
      %p194 = scmp.eq.s32.totalorder %s193, 0
      %s196 = sadd.s32 %s195, 1
      %s197 = scalar_select %p194, %s195, %s196
      %p200 = pneg %p194
      %p201 = scmp.eq.s32.totalorder %s21, 4
      %p202 = por %p200, %p201
      %p203 = scmp.ne.s32.totalorder %s195, %s198
      %p204 = scmp.eq.s32.totalorder %s21, 0
      %p205 = por %p203, %p204
      %p206 = scmp.ne.s32.totalorder %s195, %s198
      %p207 = scmp.eq.s32.totalorder %s26, 4
      %p208 = por %p206, %p207
      %p209 = scmp.ne.s32.totalorder %s198, %s199
      %p210 = scmp.eq.s32.totalorder %s26, 0
      %p211 = por %p209, %p210
      %p212 = scmp.ne.s32.totalorder %s198, %s199
      %p213 = scmp.eq.s32.totalorder %s27, 4
      %p214 = por %p212, %p213
      %p216 = scmp.ne.s32.totalorder %s199, %s215
      %p217 = scmp.eq.s32.totalorder %s27, 0
      %p218 = por %p216, %p217
      %s219 = ssub.s32 %s28, %s40
      %p220 = scmp.eq.s32.totalorder %s219, 0
      %s222 = sadd.s32 %s221, 1
      %s223 = scalar_select %p220, %s221, %s222
      %p226 = pneg %p220
      %p227 = scmp.eq.s32.totalorder %s21, 4
      %p228 = por %p226, %p227
      %p229 = scmp.ne.s32.totalorder %s221, %s224
      %p230 = scmp.eq.s32.totalorder %s21, 0
      %p231 = por %p229, %p230
      %p232 = scmp.ne.s32.totalorder %s221, %s224
      %p233 = scmp.eq.s32.totalorder %s26, 4
      %p234 = por %p232, %p233
      %p235 = scmp.ne.s32.totalorder %s224, %s225
      %p236 = scmp.eq.s32.totalorder %s26, 0
      %p237 = por %p235, %p236
      %p238 = scmp.ne.s32.totalorder %s224, %s225
      %p239 = scmp.eq.s32.totalorder %s27, 4
      %p240 = por %p238, %p239
      %p242 = scmp.ne.s32.totalorder %s225, %s241
      %p243 = scmp.eq.s32.totalorder %s27, 0
      %p244 = por %p242, %p243
      %s245 = ssub.s32 %s29, %s36
      %s246 = ssub.s32 %s28, %s40
      %s247 = sor.u32 %s245, %s246
      %p248 = scmp.eq.s32.totalorder %s247, 0
      %s250 = sadd.s32 %s249, 1
      %s251 = scalar_select %p248, %s249, %s250
      %p254 = pneg %p248
      %p255 = scmp.eq.s32.totalorder %s21, 4
      %p256 = por %p254, %p255
      %p257 = scmp.ne.s32.totalorder %s249, %s252
      %p258 = scmp.eq.s32.totalorder %s21, 0
      %p259 = por %p257, %p258
      %p260 = scmp.ne.s32.totalorder %s249, %s252
      %p261 = scmp.eq.s32.totalorder %s26, 4
      %p262 = por %p260, %p261
      %p263 = scmp.ne.s32.totalorder %s252, %s253
      %p264 = scmp.eq.s32.totalorder %s26, 0
      %p265 = por %p263, %p264
      %p266 = scmp.ne.s32.totalorder %s252, %s253
      %p267 = scmp.eq.s32.totalorder %s27, 4
      %p268 = por %p266, %p267
      %p270 = scmp.ne.s32.totalorder %s253, %s269
      %p271 = scmp.eq.s32.totalorder %s27, 0
      %p272 = por %p270, %p271
      %p273 = scmp.le.s32.totalorder 1, %s21
      %p274 = scmp.lt.s32.totalorder %s21, 6
      %p275 = pnand %p273, %p274
      %p276 = pneg %p275
      // Predicated region
      $region9: #{_select_and_mlp.1} parent=5 // pred_check
        _
      $region10: #{_select_and_mlp.1} parent=5 // pred_check_branch
        %278 = sbr.rel (%p275) target = $region12
      $region11: #{_select_and_mlp.1} parent=5 // pred_region
        %s279 = ssub.s32 %s21, 1
        // Predicated region
        $region13: #{_select_and_mlp.1} parent=11 // pred_check
          %p280 = pneg %p59
        $region14: #{_select_and_mlp.1} parent=11 // pred_check_branch
          %282 = sbr.rel (%p280) target = $region16
        $region15: #{_select_and_mlp.1} parent=11 // pred_region
          %s283 = smul.u32 8, %s31
          %s284 = ssub.s32 1, %s283
          %p285 = scmp.lt.s32.totalorder %s283, 0
          %s286 = scalar_select %p285, %s283, 0
          %s287 = scalar_lea.vmem %s0, %s286
          %s288 = smul.u32 8, %s31
          %s289 = ssub.s32 1, %s288
        $region16: #{_select_and_mlp.1} parent=11 // pred_fallthru
          _
        // Predicated region
        $region17: #{_select_and_mlp.1} parent=11 // pred_check
          %p290 = pneg %p80
        $region18: #{_select_and_mlp.1} parent=11 // pred_check_branch
          %292 = sbr.rel (%p290) target = $region20
        $region19: #{_select_and_mlp.1} parent=11 // pred_region
          _
        $region20: #{_select_and_mlp.1} parent=11 // pred_fallthru
          _
        // Predicated region
        $region21: #{_select_and_mlp.1} parent=11 // pred_check
          %p293 = pneg %p101
        $region22: #{_select_and_mlp.1} parent=11 // pred_check_branch
          %295 = sbr.rel (%p293) target = $region24
        $region23: #{_select_and_mlp.1} parent=11 // pred_region
          %297 = vsyncadd [#allocation3], 0
          %s299 = sshll.u32 %s2, 4
          %s300 = int_to_ptr.hbm [resolvable:$true] %s299
          %s301 = sshll.u32 [#allocation2], 4
          %s302 = int_to_ptr.vmem [resolvable:$true] %s301
          %304 = dma.hbm_to_vmem [thread:$0]  %s300, 16, %s302, [#allocation3]
        $region24: #{_select_and_mlp.1} parent=11 // pred_fallthru
          _
        // Predicated region
        $region25: #{_select_and_mlp.1} parent=11 // pred_check
          %p305 = pneg %p122
        $region26: #{_select_and_mlp.1} parent=11 // pred_check_branch
          %307 = sbr.rel (%p305) target = $region28
        $region27: #{_select_and_mlp.1} parent=11 // pred_region
          %309 = vsyncadd [#allocation5], 0
          %s310 = sshll.u32 %s3, 4
          %s311 = int_to_ptr.hbm [resolvable:$true] %s310
          %s312 = sshll.u32 [#allocation4], 4
          %s313 = int_to_ptr.vmem [resolvable:$true] %s312
          %318 = dma.hbm_to_vmem [thread:$0]  %s311, 512, %s313, [#allocation5], 64, 64, 4
        $region28: #{_select_and_mlp.1} parent=11 // pred_fallthru
          _
        // Predicated region
        $region29: #{_select_and_mlp.1} parent=11 // pred_check
          %p319 = pneg %p143
        $region30: #{_select_and_mlp.1} parent=11 // pred_check_branch
          %321 = sbr.rel (%p319) target = $region32
        $region31: #{_select_and_mlp.1} parent=11 // pred_region
          %323 = vsyncadd [#allocation5], 0
          %s325 = sshll.u32 %s4, 4
          %s326 = int_to_ptr.hbm [resolvable:$true] %s325
          %s327 = sshll.u32 [#allocation6], 4
          %s328 = int_to_ptr.vmem [resolvable:$true] %s327
          %330 = dma.hbm_to_vmem [thread:$0]  %s326, 16, %s328, [#allocation5]
        $region32: #{_select_and_mlp.1} parent=11 // pred_fallthru
          _
        // Predicated region
        $region33: #{_select_and_mlp.1} parent=11 // pred_check
          %p331 = pneg %p164
        $region34: #{_select_and_mlp.1} parent=11 // pred_check_branch
          %333 = sbr.rel (%p331) target = $region36
        $region35: #{_select_and_mlp.1} parent=11 // pred_region
          %335 = vsyncadd [#allocation8], 0
          %s336 = sshll.u32 %s5, 4
          %s337 = int_to_ptr.hbm [resolvable:$true] %s336
          %s338 = sshll.u32 [#allocation7], 4
          %s339 = int_to_ptr.vmem [resolvable:$true] %s338
          %344 = dma.hbm_to_vmem [thread:$0]  %s337, 512, %s339, [#allocation8], 64, 64, 4
        $region36: #{_select_and_mlp.1} parent=11 // pred_fallthru
          _
        // Predicated region
        $region37: #{_select_and_mlp.1} parent=11 // pred_check
          %p345 = pneg %p185
        $region38: #{_select_and_mlp.1} parent=11 // pred_check_branch
          %347 = sbr.rel (%p345) target = $region40
        $region39: #{_select_and_mlp.1} parent=11 // pred_region
          %349 = vsyncadd [#allocation8], 0
          %s351 = sshll.u32 %s6, 4
          %s352 = int_to_ptr.hbm [resolvable:$true] %s351
          %s353 = sshll.u32 [#allocation9], 4
          %s354 = int_to_ptr.vmem [resolvable:$true] %s353
          %356 = dma.hbm_to_vmem [thread:$0]  %s352, 16, %s354, [#allocation8]
        $region40: #{_select_and_mlp.1} parent=11 // pred_fallthru
          _
      $region12: #{_select_and_mlp.1} parent=5 // pred_fallthru
        _
      %p357 = scmp.lt.s32.totalorder %s21, 5
      // Predicated region
      $region41: #{_select_and_mlp.1} parent=5 // pred_check
        %p358 = pneg %p357
      $region42: #{_select_and_mlp.1} parent=5 // pred_check_branch
        %360 = sbr.rel (%p358) target = $region44
      $region43: #{_select_and_mlp.1} parent=5 // pred_region
        // Predicated region
        $region45: #{_select_and_mlp.1} parent=43 // pred_check
          %p361 = pneg %p205
        $region46: #{_select_and_mlp.1} parent=43 // pred_check_branch
          %363 = sbr.rel (%p361) target = $region48
        $region47: #{_select_and_mlp.1} parent=43 // pred_region
          %s364 = sand.u32 %s21, 1
          %s365 = scalar_lea.sflag [#allocation11], %s364
          %s366 = sand.u32 %s195, 1
          %s367 = smul.addr %s366, 512
          %s368 = scalar_lea.vmem [#allocation10], %s367
          %s369 = smul.u32 16, %s28
          %371 = vsyncadd %s365, 0
          %s372 = smul.addr %s369, 4
          %s373 = scalar_lea.hbm %s7, %s372
          %s374 = sshll.u32 %s373, 4
          %s375 = int_to_ptr.hbm [resolvable:$true] %s374
          %s376 = sshll.u32 %s368, 4
          %s377 = int_to_ptr.vmem [resolvable:$true] %s376
          %382 = dma.hbm_to_vmem [thread:$0]  %s375, 8192, %s377, %s365, 5120, 1024, 64
        $region48: #{_select_and_mlp.1} parent=43 // pred_fallthru
          _
        // Predicated region
        $region49: #{_select_and_mlp.1} parent=43 // pred_check
          %p383 = pneg %p231
        $region50: #{_select_and_mlp.1} parent=43 // pred_check_branch
          %385 = sbr.rel (%p383) target = $region52
        $region51: #{_select_and_mlp.1} parent=43 // pred_region
          %s386 = sand.u32 %s21, 1
          %s387 = scalar_lea.sflag [#allocation11], %s386
          %s388 = sand.u32 %s221, 1
          %s389 = smul.addr %s388, 16
          %s390 = scalar_lea.vmem [#allocation12], %s389
          %s391 = smul.u32 16, %s28
          %393 = vsyncadd %s387, 0
          %s394 = scalar_lea.hbm %s8, %s391
          %s396 = sshll.u32 %s394, 4
          %s397 = int_to_ptr.hbm [resolvable:$true] %s396
          %s398 = sshll.u32 %s390, 4
          %s399 = int_to_ptr.vmem [resolvable:$true] %s398
          %401 = dma.hbm_to_vmem [thread:$0]  %s397, 256, %s399, %s387
        $region52: #{_select_and_mlp.1} parent=43 // pred_fallthru
          _
      $region44: #{_select_and_mlp.1} parent=5 // pred_fallthru
        _
      %p402 = scmp.le.s32.totalorder 1, %s21
      %p403 = scmp.lt.s32.totalorder %s21, 6
      %p404 = pnand %p402, %p403
      %p405 = pneg %p404
      // Predicated region
      $region53: #{_select_and_mlp.1} parent=5 // pred_check
        _
      $region54: #{_select_and_mlp.1} parent=5 // pred_check_branch
        %407 = sbr.rel (%p404) target = $region56
      $region55: #{_select_and_mlp.1} parent=5 // pred_region
        %s408 = ssub.s32 %s21, 1
        // Predicated region
        $region57: #{_select_and_mlp.1} parent=55 // pred_check
          %p409 = pneg %p101
        $region58: #{_select_and_mlp.1} parent=55 // pred_check_branch
          %411 = sbr.rel (%p409) target = $region60
        $region59: #{_select_and_mlp.1} parent=55 // pred_region
          %413 = dma.done [#allocation3], 16
        $region60: #{_select_and_mlp.1} parent=55 // pred_fallthru
          _
        // Predicated region
        $region61: #{_select_and_mlp.1} parent=55 // pred_check
          %p414 = pneg %p122
        $region62: #{_select_and_mlp.1} parent=55 // pred_check_branch
          %416 = sbr.rel (%p414) target = $region64
        $region63: #{_select_and_mlp.1} parent=55 // pred_region
          %418 = dma.done [#allocation5], 512
        $region64: #{_select_and_mlp.1} parent=55 // pred_fallthru
          _
        // Predicated region
        $region65: #{_select_and_mlp.1} parent=55 // pred_check
          %p419 = pneg %p143
        $region66: #{_select_and_mlp.1} parent=55 // pred_check_branch
          %421 = sbr.rel (%p419) target = $region68
        $region67: #{_select_and_mlp.1} parent=55 // pred_region
          %423 = dma.done [#allocation5], 16
        $region68: #{_select_and_mlp.1} parent=55 // pred_fallthru
          _
        // Predicated region
        $region69: #{_select_and_mlp.1} parent=55 // pred_check
          %p424 = pneg %p164
        $region70: #{_select_and_mlp.1} parent=55 // pred_check_branch
          %426 = sbr.rel (%p424) target = $region72
        $region71: #{_select_and_mlp.1} parent=55 // pred_region
          %428 = dma.done [#allocation8], 512
        $region72: #{_select_and_mlp.1} parent=55 // pred_fallthru
          _
        // Predicated region
        $region73: #{_select_and_mlp.1} parent=55 // pred_check
          %p429 = pneg %p185
        $region74: #{_select_and_mlp.1} parent=55 // pred_check_branch
          %431 = sbr.rel (%p429) target = $region76
        $region75: #{_select_and_mlp.1} parent=55 // pred_region
          %433 = dma.done [#allocation8], 16
        $region76: #{_select_and_mlp.1} parent=55 // pred_fallthru
          _
        %s434 = sand.u32 %s26, 1
        %s435 = scalar_lea.sflag [#allocation11], %s434
        %s436 = sand.u32 %s198, 1
        %s437 = smul.addr %s436, 512
        %s438 = scalar_lea.vmem [#allocation10], %s437
        // Predicated region
        $region77: #{_select_and_mlp.1} parent=55 // pred_check
          %p439 = pneg %p211
        $region78: #{_select_and_mlp.1} parent=55 // pred_check_branch
          %441 = sbr.rel (%p439) target = $region80
        $region79: #{_select_and_mlp.1} parent=55 // pred_region
          %443 = dma.done %s435, 8192
        $region80: #{_select_and_mlp.1} parent=55 // pred_fallthru
          _
        %s444 = sand.u32 %s26, 1
        %s445 = scalar_lea.sflag [#allocation11], %s444
        %s446 = sand.u32 %s224, 1
        %s447 = smul.addr %s446, 16
        %s448 = scalar_lea.vmem [#allocation12], %s447
        // Predicated region
        $region81: #{_select_and_mlp.1} parent=55 // pred_check
          %p449 = pneg %p237
        $region82: #{_select_and_mlp.1} parent=55 // pred_check_branch
          %451 = sbr.rel (%p449) target = $region84
        $region83: #{_select_and_mlp.1} parent=55 // pred_region
          %453 = dma.done %s445, 256
        $region84: #{_select_and_mlp.1} parent=55 // pred_fallthru
          _
        %s454 = smul.u32 8, %s31
        %s455 = ssub.s32 1, %s454
        %p456 = scmp.lt.s32.totalorder %s454, 0
        %s457 = scalar_select %p456, %s454, 0
        %s458 = scalar_lea.vmem %s0, %s457
        %p459 = pneg %p59
        %p460 = pneg %p56
        %p461 = pneg %p80
        %p462 = pneg %p77
        %p463 = pneg %p101
        %p464 = pneg %p98
        %p465 = pneg %p122
        %p466 = pneg %p119
        %p467 = pneg %p143
        %p468 = pneg %p140
        %p469 = pneg %p164
        %p470 = pneg %p161
        %p471 = pneg %p185
        %p472 = pneg %p182
        %s473 = sand.u32 %s26, 1
        %s474 = scalar_lea.sflag [#allocation11], %s473
        %s475 = sand.u32 %s198, 1
        %s476 = smul.addr %s475, 512
        %s477 = scalar_lea.vmem [#allocation10], %s476
        %p478 = pneg %p211
        %p479 = pneg %p208
        %s480 = sand.u32 %s26, 1
        %s481 = scalar_lea.sflag [#allocation11], %s480
        %s482 = sand.u32 %s224, 1
        %s483 = smul.addr %s482, 16
        %s484 = scalar_lea.vmem [#allocation12], %s483
        %p485 = pneg %p237
        %p486 = pneg %p234
        %p487 = pneg %p265
        %p488 = pneg %p262
        %s489 = sand.u32 %s252, 1
        %s490 = sand.u32 %s252, 1
        %s491 = smul.addr %s490, 256
        %s492 = scalar_lea.vmem [#allocation13], %s491
        %s493 = smul.u32 8, %s31
        %s494 = ssub.s32 1, %s493
        %p495 = scmp.lt.s32.totalorder %s493, 0
        %s496 = scalar_select %p495, %s493, 0
        %s497 = scalar_lea.vmem %s0, %s496
        %s498 = smul.u32 8, %s31
        %s499 = ssub.s32 1, %s498
        %s500 = smul.u32 16, %s30
        %s501 = smul.u32 16, %s30
        %s502 = smul.u32 8, %s31
        %s503 = smul.u32 16, %s30
        %s504 = ssub.s32 1, %s502
        %s505 = smul.u32 2, %s504
        %s506 = ssub.s32 79, %s503
        %p507 = scmp.lt.s32.totalorder %s506, 16
        %s508 = scalar_select %p507, %s506, 16
        %s509 = smul.u32 %s505, %s508
        %v511 = vld [vmem:[%s497] sm:$0x1]
        %v512 = vld [vmem:[%s497 + $0x1] sm:$0x1]
        %v513 = vld [vmem:[%s497 + $0x2] sm:$0x1]
        %v514 = vld [vmem:[%s497 + $0x3] sm:$0x1]
        %v515 = vld [vmem:[%s497 + $0x4] sm:$0x1]
        %v516 = vld [vmem:[%s497 + $0x5] sm:$0x1]
        %v517 = vld [vmem:[%s497 + $0x6] sm:$0x1]
        %v518 = vld [vmem:[%s497 + $0x7] sm:$0x1]
        %v519 = vld [vmem:[%s1] sm:$0xf]
        %v520 = vld [vmem:[%s1 + $0x4] sm:$0xf]
        %v521 = vld [vmem:[%s1 + $0x8] sm:$0xf]
        %v522 = vld [vmem:[%s1 + $0xc] sm:$0xf]
        %v523 = vld [vmem:[%s1 + $0x10] sm:$0xf]
        %v524 = vld [vmem:[%s1 + $0x14] sm:$0xf]
        %v525 = vld [vmem:[%s1 + $0x18] sm:$0xf]
        %v526 = vld [vmem:[%s1 + $0x1c] sm:$0xf]
        %v527 = vld [vmem:[%s1 + $0x20] sm:$0xf]
        %v528 = vld [vmem:[%s1 + $0x24] sm:$0xf]
        %v529 = vld [vmem:[%s1 + $0x28] sm:$0xf]
        %v530 = vld [vmem:[%s1 + $0x2c] sm:$0xf]
        %v531 = vld [vmem:[%s1 + $0x30] sm:$0xf]
        %v532 = vld [vmem:[%s1 + $0x34] sm:$0xf]
        %v533 = vld [vmem:[%s1 + $0x38] sm:$0xf]
        %v534 = vld [vmem:[%s1 + $0x3c] sm:$0xf]
        %v535 = vld [vmem:[#allocation2] sm:$0x1]
        %v537 = vperm.slane %v535, 0
        %540 = vst [vmem:[#allocation1] ss:$9 sm:$0xff] %v511
        %s542 = scalar_lea.vmem [#allocation1], 1
        %543 = vst [vmem:[%s542] ss:$9 sm:$0xff] %v512
        %s545 = scalar_lea.vmem [#allocation1], 2
        %546 = vst [vmem:[%s545] ss:$9 sm:$0xff] %v513
        %s548 = scalar_lea.vmem [#allocation1], 3
        %549 = vst [vmem:[%s548] ss:$9 sm:$0xff] %v514
        %s551 = scalar_lea.vmem [#allocation1], 4
        %552 = vst [vmem:[%s551] ss:$9 sm:$0xff] %v515
        %s554 = scalar_lea.vmem [#allocation1], 5
        %555 = vst [vmem:[%s554] ss:$9 sm:$0xff] %v516
        %s557 = scalar_lea.vmem [#allocation1], 6
        %558 = vst [vmem:[%s557] ss:$9 sm:$0xff] %v517
        %s560 = scalar_lea.vmem [#allocation1], 7
        %561 = vst [vmem:[%s560] ss:$9 sm:$0xff] %v518
        %v562 = vld [vmem:[#allocation1] sm:$0xff]
        %v580 = vunpack.c.l.b16 %v519
        %v581 = vunpack.c.l.b16 %v520
        %v582 = vunpack.c.l.b16 %v521
        %v583 = vunpack.c.l.b16 %v522
        %v584 = vunpack.c.l.b16 %v523
        %v585 = vunpack.c.l.b16 %v524
        %v586 = vunpack.c.l.b16 %v525
        %v587 = vunpack.c.l.b16 %v526
        %v588 = vunpack.c.l.b16 %v527
        %v589 = vunpack.c.l.b16 %v528
        %v590 = vunpack.c.l.b16 %v529
        %v591 = vunpack.c.l.b16 %v530
        %v592 = vunpack.c.l.b16 %v531
        %v593 = vunpack.c.l.b16 %v532
        %v594 = vunpack.c.l.b16 %v533
        %v595 = vunpack.c.l.b16 %v534
        %v596 = vpack.c.b16 %v581, %v580
        %v597 = vpack.c.b16 %v583, %v582
        %v598 = vpack.c.b16 %v585, %v584
        %v599 = vpack.c.b16 %v587, %v586
        %v600 = vpack.c.b16 %v589, %v588
        %v601 = vpack.c.b16 %v591, %v590
        %v602 = vpack.c.b16 %v593, %v592
        %v603 = vpack.c.b16 %v595, %v594
        %612 = vmatpush.bf16.msra.mxu0 %v603
        %613 = vmatpush.bf16.msra.mxu0 %v602
        %614 = vmatpush.bf16.msra.mxu0 %v601
        %615 = vmatpush.bf16.msra.mxu0 %v600
        %616 = vmatpush.bf16.msra.mxu0 %v599
        %617 = vmatpush.bf16.msra.mxu0 %v598
        %618 = vmatpush.bf16.msra.mxu0 %v597
        %619 = vmatpush.bf16.msra.mxu0 %v596
        %620 = vmatmul.bf16.gmra.mxu0 %v562
        %v621 = vpop.f32.mrf.mxu0
        %v622 = vadd.f32 %v537, %v621
        %v623 = vpop.f32.mrf.mxu0
        %v624 = vadd.f32 %v537, %v623
        %625 = vdwg.mxu0
        %v626 = vtanh.pop %v622
        %v627 = vtanh.pop %v624
        %v628 = vpack.c.bf16 %v627, %v626
        %v629 = vld [vmem:[#allocation4] sm:$0xf]
        %v630 = vld [vmem:[#allocation4 + $0x4] sm:$0xf]
        %v631 = vld [vmem:[#allocation4 + $0x8] sm:$0xf]
        %v632 = vld [vmem:[#allocation4 + $0xc] sm:$0xf]
        %v633 = vld [vmem:[#allocation4 + $0x10] sm:$0xf]
        %v634 = vld [vmem:[#allocation4 + $0x14] sm:$0xf]
        %v635 = vld [vmem:[#allocation4 + $0x18] sm:$0xf]
        %v636 = vld [vmem:[#allocation4 + $0x1c] sm:$0xf]
        %v637 = vld [vmem:[#allocation6] sm:$0x1]
        %v639 = vperm.slane %v637, 0
        %v649 = vunpack.c.l.b16 %v629
        %v650 = vunpack.c.l.b16 %v630
        %v651 = vunpack.c.l.b16 %v631
        %v652 = vunpack.c.l.b16 %v632
        %v653 = vunpack.c.l.b16 %v633
        %v654 = vunpack.c.l.b16 %v634
        %v655 = vunpack.c.l.b16 %v635
        %v656 = vunpack.c.l.b16 %v636
        %v657 = vpack.c.b16 %v650, %v649
        %v658 = vpack.c.b16 %v652, %v651
        %v659 = vpack.c.b16 %v654, %v653
        %v660 = vpack.c.b16 %v656, %v655
        %vm665 = vcmask 523264
        %v667 = vsel %vm665, %v628, 0
        %669 = vmatpush.bf16.msra.mxu0 0
        %670 = vmatpush.bf16.msra.mxu0 0
        %671 = vmatpush.bf16.msra.mxu0 0
        %672 = vmatpush.bf16.msra.mxu0 0
        %673 = vmatpush.bf16.msra.mxu0 %v660
        %674 = vmatpush.bf16.msra.mxu0 %v659
        %675 = vmatpush.bf16.msra.mxu0 %v658
        %676 = vmatpush.bf16.msra.mxu0 %v657
        %677 = vmatmul.bf16.gmra.mxu0 %v667
        %v678 = vpop.f32.mrf.mxu0
        %v679 = vadd.f32 %v639, %v678
        %v680 = vpop.f32.mrf.mxu0
        %v681 = vadd.f32 %v639, %v680
        %682 = vdwg.mxu0
        %v683 = vtanh.pop %v679
        %v684 = vtanh.pop %v681
        %v685 = vpack.c.bf16 %v684, %v683
        %v686 = vld [vmem:[#allocation7] sm:$0xf]
        %v687 = vld [vmem:[#allocation7 + $0x4] sm:$0xf]
        %v688 = vld [vmem:[#allocation7 + $0x8] sm:$0xf]
        %v689 = vld [vmem:[#allocation7 + $0xc] sm:$0xf]
        %v690 = vld [vmem:[#allocation7 + $0x10] sm:$0xf]
        %v691 = vld [vmem:[#allocation7 + $0x14] sm:$0xf]
        %v692 = vld [vmem:[#allocation7 + $0x18] sm:$0xf]
        %v693 = vld [vmem:[#allocation7 + $0x1c] sm:$0xf]
        %v694 = vld [vmem:[#allocation9] sm:$0x1]
        %v696 = vperm.slane %v694, 0
        %v706 = vunpack.c.l.b16 %v686
        %v707 = vunpack.c.l.b16 %v687
        %v708 = vunpack.c.l.b16 %v688
        %v709 = vunpack.c.l.b16 %v689
        %v710 = vunpack.c.l.b16 %v690
        %v711 = vunpack.c.l.b16 %v691
        %v712 = vunpack.c.l.b16 %v692
        %v713 = vunpack.c.l.b16 %v693
        %v714 = vpack.c.b16 %v707, %v706
        %v715 = vpack.c.b16 %v709, %v708
        %v716 = vpack.c.b16 %v711, %v710
        %v717 = vpack.c.b16 %v713, %v712
        %v723 = vsel %vm665, %v685, 0
        %725 = vmatpush.bf16.msra.mxu0 0
        %726 = vmatpush.bf16.msra.mxu0 0
        %727 = vmatpush.bf16.msra.mxu0 0
        %728 = vmatpush.bf16.msra.mxu0 0
        %729 = vmatpush.bf16.msra.mxu0 %v717
        %730 = vmatpush.bf16.msra.mxu0 %v716
        %731 = vmatpush.bf16.msra.mxu0 %v715
        %732 = vmatpush.bf16.msra.mxu0 %v714
        %733 = vmatmul.bf16.gmra.mxu0 %v723
        %v734 = vpop.f32.mrf.mxu0
        %v735 = vadd.f32 %v696, %v734
        %v736 = vpop.f32.mrf.mxu0
        %v737 = vadd.f32 %v696, %v736
        %738 = vdwg.mxu0
        %v739 = vtanh.pop %v735
        %v740 = vtanh.pop %v737
        %v741 = vpack.c.bf16 %v740, %v739
        %v742 = vld [vmem:[%s438] sm:$0xff]
        %v743 = vld [vmem:[%s438 + $0x8] sm:$0xff]
        %v744 = vld [vmem:[%s438 + $0x10] sm:$0xff]
        %v745 = vld [vmem:[%s438 + $0x18] sm:$0xff]
        %v746 = vld [vmem:[%s438 + $0x20] sm:$0xff]
        %v747 = vld [vmem:[%s438 + $0x28] sm:$0xff]
        %v748 = vld [vmem:[%s438 + $0x30] sm:$0xff]
        %v749 = vld [vmem:[%s438 + $0x38] sm:$0xff]
        %v750 = vld [vmem:[%s438 + $0x40] sm:$0xff]
        %v751 = vld [vmem:[%s438 + $0x48] sm:$0xff]
        %v752 = vld [vmem:[%s438 + $0x50] sm:$0xff]
        %v753 = vld [vmem:[%s438 + $0x58] sm:$0xff]
        %v754 = vld [vmem:[%s438 + $0x60] sm:$0xff]
        %v755 = vld [vmem:[%s438 + $0x68] sm:$0xff]
        %v756 = vld [vmem:[%s438 + $0x70] sm:$0xff]
        %v757 = vld [vmem:[%s438 + $0x78] sm:$0xff]
        %v758 = vld [vmem:[%s438 + $0x80] sm:$0xff]
        %v759 = vld [vmem:[%s438 + $0x88] sm:$0xff]
        %v760 = vld [vmem:[%s438 + $0x90] sm:$0xff]
        %v761 = vld [vmem:[%s438 + $0x98] sm:$0xff]
        %v762 = vld [vmem:[%s438 + $0xa0] sm:$0xff]
        %v763 = vld [vmem:[%s438 + $0xa8] sm:$0xff]
        %v764 = vld [vmem:[%s438 + $0xb0] sm:$0xff]
        %v765 = vld [vmem:[%s438 + $0xb8] sm:$0xff]
        %v766 = vld [vmem:[%s438 + $0xc0] sm:$0xff]
        %v767 = vld [vmem:[%s438 + $0xc8] sm:$0xff]
        %v768 = vld [vmem:[%s438 + $0xd0] sm:$0xff]
        %v769 = vld [vmem:[%s438 + $0xd8] sm:$0xff]
        %v770 = vld [vmem:[%s438 + $0xe0] sm:$0xff]
        %v771 = vld [vmem:[%s438 + $0xe8] sm:$0xff]
        %v772 = vld [vmem:[%s438 + $0xf0] sm:$0xff]
        %v773 = vld [vmem:[%s438 + $0xf8] sm:$0xff]
        %v774 = vld [vmem:[%s438 + $0x100] sm:$0xff]
        %v775 = vld [vmem:[%s438 + $0x108] sm:$0xff]
        %v776 = vld [vmem:[%s438 + $0x110] sm:$0xff]
        %v777 = vld [vmem:[%s438 + $0x118] sm:$0xff]
        %v778 = vld [vmem:[%s438 + $0x120] sm:$0xff]
        %v779 = vld [vmem:[%s438 + $0x128] sm:$0xff]
        %v780 = vld [vmem:[%s438 + $0x130] sm:$0xff]
        %v781 = vld [vmem:[%s438 + $0x138] sm:$0xff]
        %v782 = vld [vmem:[%s438 + $0x140] sm:$0xff]
        %v783 = vld [vmem:[%s438 + $0x148] sm:$0xff]
        %v784 = vld [vmem:[%s438 + $0x150] sm:$0xff]
        %v785 = vld [vmem:[%s438 + $0x158] sm:$0xff]
        %v786 = vld [vmem:[%s438 + $0x160] sm:$0xff]
        %v787 = vld [vmem:[%s438 + $0x168] sm:$0xff]
        %v788 = vld [vmem:[%s438 + $0x170] sm:$0xff]
        %v789 = vld [vmem:[%s438 + $0x178] sm:$0xff]
        %v790 = vld [vmem:[%s438 + $0x180] sm:$0xff]
        %v791 = vld [vmem:[%s438 + $0x188] sm:$0xff]
        %v792 = vld [vmem:[%s438 + $0x190] sm:$0xff]
        %v793 = vld [vmem:[%s438 + $0x198] sm:$0xff]
        %v794 = vld [vmem:[%s438 + $0x1a0] sm:$0xff]
        %v795 = vld [vmem:[%s438 + $0x1a8] sm:$0xff]
        %v796 = vld [vmem:[%s438 + $0x1b0] sm:$0xff]
        %v797 = vld [vmem:[%s438 + $0x1b8] sm:$0xff]
        %v798 = vld [vmem:[%s438 + $0x1c0] sm:$0xff]
        %v799 = vld [vmem:[%s438 + $0x1c8] sm:$0xff]
        %v800 = vld [vmem:[%s438 + $0x1d0] sm:$0xff]
        %v801 = vld [vmem:[%s438 + $0x1d8] sm:$0xff]
        %v802 = vld [vmem:[%s438 + $0x1e0] sm:$0xff]
        %v803 = vld [vmem:[%s438 + $0x1e8] sm:$0xff]
        %v804 = vld [vmem:[%s438 + $0x1f0] sm:$0xff]
        %v805 = vld [vmem:[%s438 + $0x1f8] sm:$0xff]
        %v806 = vld [vmem:[%s448] sm:$0xff]
        %v807 = vld [vmem:[%s448 + $0x8] sm:$0xff]
        %v810 = vperm.slane %v806, 0
        %v811 = vperm.slane %v806, 1
        %v812 = vperm.slane %v806, 2
        %v813 = vperm.slane %v806, 3
        %v814 = vperm.slane %v806, 4
        %v815 = vperm.slane %v806, 5
        %v816 = vperm.slane %v806, 6
        %v817 = vperm.slane %v806, 7
        %v818 = vperm.slane %v807, 0
        %v819 = vperm.slane %v807, 1
        %v820 = vperm.slane %v807, 2
        %v821 = vperm.slane %v807, 3
        %v822 = vperm.slane %v807, 4
        %v823 = vperm.slane %v807, 5
        %v824 = vperm.slane %v807, 6
        %v825 = vperm.slane %v807, 7
        %v906 = vunpack.c.l.b16 %v742
        %v907 = vunpack.c.h.b16 %v742
        %v908 = vunpack.c.l.b16 %v743
        %v909 = vunpack.c.h.b16 %v743
        %v910 = vunpack.c.l.b16 %v744
        %v911 = vunpack.c.h.b16 %v744
        %v912 = vunpack.c.l.b16 %v745
        %v913 = vunpack.c.h.b16 %v745
        %v914 = vunpack.c.l.b16 %v746
        %v915 = vunpack.c.h.b16 %v746
        %v916 = vunpack.c.l.b16 %v747
        %v917 = vunpack.c.h.b16 %v747
        %v918 = vunpack.c.l.b16 %v748
        %v919 = vunpack.c.h.b16 %v748
        %v920 = vunpack.c.l.b16 %v749
        %v921 = vunpack.c.h.b16 %v749
        %v922 = vunpack.c.l.b16 %v750
        %v923 = vunpack.c.h.b16 %v750
        %v924 = vunpack.c.l.b16 %v751
        %v925 = vunpack.c.h.b16 %v751
        %v926 = vunpack.c.l.b16 %v752
        %v927 = vunpack.c.h.b16 %v752
        %v928 = vunpack.c.l.b16 %v753
        %v929 = vunpack.c.h.b16 %v753
        %v930 = vunpack.c.l.b16 %v754
        %v931 = vunpack.c.h.b16 %v754
        %v932 = vunpack.c.l.b16 %v755
        %v933 = vunpack.c.h.b16 %v755
        %v934 = vunpack.c.l.b16 %v756
        %v935 = vunpack.c.h.b16 %v756
        %v936 = vunpack.c.l.b16 %v757
        %v937 = vunpack.c.h.b16 %v757
        %v938 = vunpack.c.l.b16 %v758
        %v939 = vunpack.c.h.b16 %v758
        %v940 = vunpack.c.l.b16 %v759
        %v941 = vunpack.c.h.b16 %v759
        %v942 = vunpack.c.l.b16 %v760
        %v943 = vunpack.c.h.b16 %v760
        %v944 = vunpack.c.l.b16 %v761
        %v945 = vunpack.c.h.b16 %v761
        %v946 = vunpack.c.l.b16 %v762
        %v947 = vunpack.c.h.b16 %v762
        %v948 = vunpack.c.l.b16 %v763
        %v949 = vunpack.c.h.b16 %v763
        %v950 = vunpack.c.l.b16 %v764
        %v951 = vunpack.c.h.b16 %v764
        %v952 = vunpack.c.l.b16 %v765
        %v953 = vunpack.c.h.b16 %v765
        %v954 = vunpack.c.l.b16 %v766
        %v955 = vunpack.c.h.b16 %v766
        %v956 = vunpack.c.l.b16 %v767
        %v957 = vunpack.c.h.b16 %v767
        %v958 = vunpack.c.l.b16 %v768
        %v959 = vunpack.c.h.b16 %v768
        %v960 = vunpack.c.l.b16 %v769
        %v961 = vunpack.c.h.b16 %v769
        %v962 = vunpack.c.l.b16 %v770
        %v963 = vunpack.c.h.b16 %v770
        %v964 = vunpack.c.l.b16 %v771
        %v965 = vunpack.c.h.b16 %v771
        %v966 = vunpack.c.l.b16 %v772
        %v967 = vunpack.c.h.b16 %v772
        %v968 = vunpack.c.l.b16 %v773
        %v969 = vunpack.c.h.b16 %v773
        %v970 = vunpack.c.l.b16 %v774
        %v971 = vunpack.c.h.b16 %v774
        %v972 = vunpack.c.l.b16 %v775
        %v973 = vunpack.c.h.b16 %v775
        %v974 = vunpack.c.l.b16 %v776
        %v975 = vunpack.c.h.b16 %v776
        %v976 = vunpack.c.l.b16 %v777
        %v977 = vunpack.c.h.b16 %v777
        %v978 = vunpack.c.l.b16 %v778
        %v979 = vunpack.c.h.b16 %v778
        %v980 = vunpack.c.l.b16 %v779
        %v981 = vunpack.c.h.b16 %v779
        %v982 = vunpack.c.l.b16 %v780
        %v983 = vunpack.c.h.b16 %v780
        %v984 = vunpack.c.l.b16 %v781
        %v985 = vunpack.c.h.b16 %v781
        %v986 = vunpack.c.l.b16 %v782
        %v987 = vunpack.c.h.b16 %v782
        %v988 = vunpack.c.l.b16 %v783
        %v989 = vunpack.c.h.b16 %v783
        %v990 = vunpack.c.l.b16 %v784
        %v991 = vunpack.c.h.b16 %v784
        %v992 = vunpack.c.l.b16 %v785
        %v993 = vunpack.c.h.b16 %v785
        %v994 = vunpack.c.l.b16 %v786
        %v995 = vunpack.c.h.b16 %v786
        %v996 = vunpack.c.l.b16 %v787
        %v997 = vunpack.c.h.b16 %v787
        %v998 = vunpack.c.l.b16 %v788
        %v999 = vunpack.c.h.b16 %v788
        %v1000 = vunpack.c.l.b16 %v789
        %v1001 = vunpack.c.h.b16 %v789
        %v1002 = vunpack.c.l.b16 %v790
        %v1003 = vunpack.c.h.b16 %v790
        %v1004 = vunpack.c.l.b16 %v791
        %v1005 = vunpack.c.h.b16 %v791
        %v1006 = vunpack.c.l.b16 %v792
        %v1007 = vunpack.c.h.b16 %v792
        %v1008 = vunpack.c.l.b16 %v793
        %v1009 = vunpack.c.h.b16 %v793
        %v1010 = vunpack.c.l.b16 %v794
        %v1011 = vunpack.c.h.b16 %v794
        %v1012 = vunpack.c.l.b16 %v795
        %v1013 = vunpack.c.h.b16 %v795
        %v1014 = vunpack.c.l.b16 %v796
        %v1015 = vunpack.c.h.b16 %v796
        %v1016 = vunpack.c.l.b16 %v797
        %v1017 = vunpack.c.h.b16 %v797
        %v1018 = vunpack.c.l.b16 %v798
        %v1019 = vunpack.c.h.b16 %v798
        %v1020 = vunpack.c.l.b16 %v799
        %v1021 = vunpack.c.h.b16 %v799
        %v1022 = vunpack.c.l.b16 %v800
        %v1023 = vunpack.c.h.b16 %v800
        %v1024 = vunpack.c.l.b16 %v801
        %v1025 = vunpack.c.h.b16 %v801
        %v1026 = vunpack.c.l.b16 %v802
        %v1027 = vunpack.c.h.b16 %v802
        %v1028 = vunpack.c.l.b16 %v803
        %v1029 = vunpack.c.h.b16 %v803
        %v1030 = vunpack.c.l.b16 %v804
        %v1031 = vunpack.c.h.b16 %v804
        %v1032 = vunpack.c.l.b16 %v805
        %v1033 = vunpack.c.h.b16 %v805
        %v1034 = vpack.c.b16 %v922, %v906
        %v1035 = vpack.c.b16 %v923, %v907
        %v1036 = vpack.c.b16 %v924, %v908
        %v1037 = vpack.c.b16 %v925, %v909
        %v1038 = vpack.c.b16 %v926, %v910
        %v1039 = vpack.c.b16 %v927, %v911
        %v1040 = vpack.c.b16 %v928, %v912
        %v1041 = vpack.c.b16 %v929, %v913
        %v1042 = vpack.c.b16 %v930, %v914
        %v1043 = vpack.c.b16 %v931, %v915
        %v1044 = vpack.c.b16 %v932, %v916
        %v1045 = vpack.c.b16 %v933, %v917
        %v1046 = vpack.c.b16 %v934, %v918
        %v1047 = vpack.c.b16 %v935, %v919
        %v1048 = vpack.c.b16 %v936, %v920
        %v1049 = vpack.c.b16 %v937, %v921
        %v1050 = vpack.c.b16 %v954, %v938
        %v1051 = vpack.c.b16 %v955, %v939
        %v1052 = vpack.c.b16 %v956, %v940
        %v1053 = vpack.c.b16 %v957, %v941
        %v1054 = vpack.c.b16 %v958, %v942
        %v1055 = vpack.c.b16 %v959, %v943
        %v1056 = vpack.c.b16 %v960, %v944
        %v1057 = vpack.c.b16 %v961, %v945
        %v1058 = vpack.c.b16 %v962, %v946
        %v1059 = vpack.c.b16 %v963, %v947
        %v1060 = vpack.c.b16 %v964, %v948
        %v1061 = vpack.c.b16 %v965, %v949
        %v1062 = vpack.c.b16 %v966, %v950
        %v1063 = vpack.c.b16 %v967, %v951
        %v1064 = vpack.c.b16 %v968, %v952
        %v1065 = vpack.c.b16 %v969, %v953
        %v1066 = vpack.c.b16 %v986, %v970
        %v1067 = vpack.c.b16 %v987, %v971
        %v1068 = vpack.c.b16 %v988, %v972
        %v1069 = vpack.c.b16 %v989, %v973
        %v1070 = vpack.c.b16 %v990, %v974
        %v1071 = vpack.c.b16 %v991, %v975
        %v1072 = vpack.c.b16 %v992, %v976
        %v1073 = vpack.c.b16 %v993, %v977
        %v1074 = vpack.c.b16 %v994, %v978
        %v1075 = vpack.c.b16 %v995, %v979
        %v1076 = vpack.c.b16 %v996, %v980
        %v1077 = vpack.c.b16 %v997, %v981
        %v1078 = vpack.c.b16 %v998, %v982
        %v1079 = vpack.c.b16 %v999, %v983
        %v1080 = vpack.c.b16 %v1000, %v984
        %v1081 = vpack.c.b16 %v1001, %v985
        %v1082 = vpack.c.b16 %v1018, %v1002
        %v1083 = vpack.c.b16 %v1019, %v1003
        %v1084 = vpack.c.b16 %v1020, %v1004
        %v1085 = vpack.c.b16 %v1021, %v1005
        %v1086 = vpack.c.b16 %v1022, %v1006
        %v1087 = vpack.c.b16 %v1023, %v1007
        %v1088 = vpack.c.b16 %v1024, %v1008
        %v1089 = vpack.c.b16 %v1025, %v1009
        %v1090 = vpack.c.b16 %v1026, %v1010
        %v1091 = vpack.c.b16 %v1027, %v1011
        %v1092 = vpack.c.b16 %v1028, %v1012
        %v1093 = vpack.c.b16 %v1029, %v1013
        %v1094 = vpack.c.b16 %v1030, %v1014
        %v1095 = vpack.c.b16 %v1031, %v1015
        %v1096 = vpack.c.b16 %v1032, %v1016
        %v1097 = vpack.c.b16 %v1033, %v1017
        %v1163 = vsel %vm665, %v741, 0
        %1165 = vmatpush.bf16.msra.mxu0 0
        %1166 = vmatpush.bf16.msra.mxu0 0
        %1167 = vmatpush.bf16.msra.mxu0 0
        %1168 = vmatpush.bf16.msra.mxu0 0
        %1169 = vmatpush.bf16.msra.mxu0 %v1082
        %1170 = vmatpush.bf16.msra.mxu0 %v1066
        %1171 = vmatpush.bf16.msra.mxu0 %v1050
        %1172 = vmatpush.bf16.msra.mxu0 %v1034
        %1173 = vmatmul.bf16.gmra.mxu0 %v1163
        %v1174 = vpop.f32.mrf.mxu0
        %v1175 = vadd.f32 %v810, %v1174
        %v1176 = vpop.f32.mrf.mxu0
        %v1177 = vadd.f32 %v810, %v1176
        %1178 = vdwg.mxu0
        %1179 = vmatpush.bf16.msra.mxu0 0
        %1180 = vmatpush.bf16.msra.mxu0 0
        %1181 = vmatpush.bf16.msra.mxu0 0
        %1182 = vmatpush.bf16.msra.mxu0 0
        %1183 = vmatpush.bf16.msra.mxu0 %v1083
        %1184 = vmatpush.bf16.msra.mxu0 %v1067
        %1185 = vmatpush.bf16.msra.mxu0 %v1051
        %1186 = vmatpush.bf16.msra.mxu0 %v1035
        %1187 = vmatmul.bf16.gmra.mxu0 %v1163
        %v1188 = vpop.f32.mrf.mxu0
        %v1189 = vadd.f32 %v811, %v1188
        %v1190 = vpop.f32.mrf.mxu0
        %v1191 = vadd.f32 %v811, %v1190
        %1192 = vdwg.mxu0
        %1193 = vmatpush.bf16.msra.mxu0 0
        %1194 = vmatpush.bf16.msra.mxu0 0
        %1195 = vmatpush.bf16.msra.mxu0 0
        %1196 = vmatpush.bf16.msra.mxu0 0
        %1197 = vmatpush.bf16.msra.mxu0 %v1084
        %1198 = vmatpush.bf16.msra.mxu0 %v1068
        %1199 = vmatpush.bf16.msra.mxu0 %v1052
        %1200 = vmatpush.bf16.msra.mxu0 %v1036
        %1201 = vmatmul.bf16.gmra.mxu0 %v1163
        %v1202 = vpop.f32.mrf.mxu0
        %v1203 = vadd.f32 %v812, %v1202
        %v1204 = vpop.f32.mrf.mxu0
        %v1205 = vadd.f32 %v812, %v1204
        %1206 = vdwg.mxu0
        %1207 = vmatpush.bf16.msra.mxu0 0
        %1208 = vmatpush.bf16.msra.mxu0 0
        %1209 = vmatpush.bf16.msra.mxu0 0
        %1210 = vmatpush.bf16.msra.mxu0 0
        %1211 = vmatpush.bf16.msra.mxu0 %v1085
        %1212 = vmatpush.bf16.msra.mxu0 %v1069
        %1213 = vmatpush.bf16.msra.mxu0 %v1053
        %1214 = vmatpush.bf16.msra.mxu0 %v1037
        %1215 = vmatmul.bf16.gmra.mxu0 %v1163
        %v1216 = vpop.f32.mrf.mxu0
        %v1217 = vadd.f32 %v813, %v1216
        %v1218 = vpop.f32.mrf.mxu0
        %v1219 = vadd.f32 %v813, %v1218
        %1220 = vdwg.mxu0
        %1221 = vmatpush.bf16.msra.mxu0 0
        %1222 = vmatpush.bf16.msra.mxu0 0
        %1223 = vmatpush.bf16.msra.mxu0 0
        %1224 = vmatpush.bf16.msra.mxu0 0
        %1225 = vmatpush.bf16.msra.mxu0 %v1086
        %1226 = vmatpush.bf16.msra.mxu0 %v1070
        %1227 = vmatpush.bf16.msra.mxu0 %v1054
        %1228 = vmatpush.bf16.msra.mxu0 %v1038
        %1229 = vmatmul.bf16.gmra.mxu0 %v1163
        %v1230 = vpop.f32.mrf.mxu0
        %v1231 = vadd.f32 %v814, %v1230
        %v1232 = vpop.f32.mrf.mxu0
        %v1233 = vadd.f32 %v814, %v1232
        %1234 = vdwg.mxu0
        %1235 = vmatpush.bf16.msra.mxu0 0
        %1236 = vmatpush.bf16.msra.mxu0 0
        %1237 = vmatpush.bf16.msra.mxu0 0
        %1238 = vmatpush.bf16.msra.mxu0 0
        %1239 = vmatpush.bf16.msra.mxu0 %v1087
        %1240 = vmatpush.bf16.msra.mxu0 %v1071
        %1241 = vmatpush.bf16.msra.mxu0 %v1055
        %1242 = vmatpush.bf16.msra.mxu0 %v1039
        %1243 = vmatmul.bf16.gmra.mxu0 %v1163
        %v1244 = vpop.f32.mrf.mxu0
        %v1245 = vadd.f32 %v815, %v1244
        %v1246 = vpop.f32.mrf.mxu0
        %v1247 = vadd.f32 %v815, %v1246
        %1248 = vdwg.mxu0
        %1249 = vmatpush.bf16.msra.mxu0 0
        %1250 = vmatpush.bf16.msra.mxu0 0
        %1251 = vmatpush.bf16.msra.mxu0 0
        %1252 = vmatpush.bf16.msra.mxu0 0
        %1253 = vmatpush.bf16.msra.mxu0 %v1088
        %1254 = vmatpush.bf16.msra.mxu0 %v1072
        %1255 = vmatpush.bf16.msra.mxu0 %v1056
        %1256 = vmatpush.bf16.msra.mxu0 %v1040
        %1257 = vmatmul.bf16.gmra.mxu0 %v1163
        %v1258 = vpop.f32.mrf.mxu0
        %v1259 = vadd.f32 %v816, %v1258
        %v1260 = vpop.f32.mrf.mxu0
        %v1261 = vadd.f32 %v816, %v1260
        %1262 = vdwg.mxu0
        %1263 = vmatpush.bf16.msra.mxu0 0
        %1264 = vmatpush.bf16.msra.mxu0 0
        %1265 = vmatpush.bf16.msra.mxu0 0
        %1266 = vmatpush.bf16.msra.mxu0 0
        %1267 = vmatpush.bf16.msra.mxu0 %v1089
        %1268 = vmatpush.bf16.msra.mxu0 %v1073
        %1269 = vmatpush.bf16.msra.mxu0 %v1057
        %1270 = vmatpush.bf16.msra.mxu0 %v1041
        %1271 = vmatmul.bf16.gmra.mxu0 %v1163
        %v1272 = vpop.f32.mrf.mxu0
        %v1273 = vadd.f32 %v817, %v1272
        %v1274 = vpop.f32.mrf.mxu0
        %v1275 = vadd.f32 %v817, %v1274
        %1276 = vdwg.mxu0
        %1277 = vmatpush.bf16.msra.mxu0 0
        %1278 = vmatpush.bf16.msra.mxu0 0
        %1279 = vmatpush.bf16.msra.mxu0 0
        %1280 = vmatpush.bf16.msra.mxu0 0
        %1281 = vmatpush.bf16.msra.mxu0 %v1090
        %1282 = vmatpush.bf16.msra.mxu0 %v1074
        %1283 = vmatpush.bf16.msra.mxu0 %v1058
        %1284 = vmatpush.bf16.msra.mxu0 %v1042
        %1285 = vmatmul.bf16.gmra.mxu0 %v1163
        %v1286 = vpop.f32.mrf.mxu0
        %v1287 = vadd.f32 %v818, %v1286
        %v1288 = vpop.f32.mrf.mxu0
        %v1289 = vadd.f32 %v818, %v1288
        %1290 = vdwg.mxu0
        %1291 = vmatpush.bf16.msra.mxu0 0
        %1292 = vmatpush.bf16.msra.mxu0 0
        %1293 = vmatpush.bf16.msra.mxu0 0
        %1294 = vmatpush.bf16.msra.mxu0 0
        %1295 = vmatpush.bf16.msra.mxu0 %v1091
        %1296 = vmatpush.bf16.msra.mxu0 %v1075
        %1297 = vmatpush.bf16.msra.mxu0 %v1059
        %1298 = vmatpush.bf16.msra.mxu0 %v1043
        %1299 = vmatmul.bf16.gmra.mxu0 %v1163
        %v1300 = vpop.f32.mrf.mxu0
        %v1301 = vadd.f32 %v819, %v1300
        %v1302 = vpop.f32.mrf.mxu0
        %v1303 = vadd.f32 %v819, %v1302
        %1304 = vdwg.mxu0
        %1305 = vmatpush.bf16.msra.mxu0 0
        %1306 = vmatpush.bf16.msra.mxu0 0
        %1307 = vmatpush.bf16.msra.mxu0 0
        %1308 = vmatpush.bf16.msra.mxu0 0
        %1309 = vmatpush.bf16.msra.mxu0 %v1092
        %1310 = vmatpush.bf16.msra.mxu0 %v1076
        %1311 = vmatpush.bf16.msra.mxu0 %v1060
        %1312 = vmatpush.bf16.msra.mxu0 %v1044
        %1313 = vmatmul.bf16.gmra.mxu0 %v1163
        %v1314 = vpop.f32.mrf.mxu0
        %v1315 = vadd.f32 %v820, %v1314
        %v1316 = vpop.f32.mrf.mxu0
        %v1317 = vadd.f32 %v820, %v1316
        %1318 = vdwg.mxu0
        %1319 = vmatpush.bf16.msra.mxu0 0
        %1320 = vmatpush.bf16.msra.mxu0 0
        %1321 = vmatpush.bf16.msra.mxu0 0
        %1322 = vmatpush.bf16.msra.mxu0 0
        %1323 = vmatpush.bf16.msra.mxu0 %v1093
        %1324 = vmatpush.bf16.msra.mxu0 %v1077
        %1325 = vmatpush.bf16.msra.mxu0 %v1061
        %1326 = vmatpush.bf16.msra.mxu0 %v1045
        %1327 = vmatmul.bf16.gmra.mxu0 %v1163
        %v1328 = vpop.f32.mrf.mxu0
        %v1329 = vadd.f32 %v821, %v1328
        %v1330 = vpop.f32.mrf.mxu0
        %v1331 = vadd.f32 %v821, %v1330
        %1332 = vdwg.mxu0
        %1333 = vmatpush.bf16.msra.mxu0 0
        %1334 = vmatpush.bf16.msra.mxu0 0
        %1335 = vmatpush.bf16.msra.mxu0 0
        %1336 = vmatpush.bf16.msra.mxu0 0
        %1337 = vmatpush.bf16.msra.mxu0 %v1094
        %1338 = vmatpush.bf16.msra.mxu0 %v1078
        %1339 = vmatpush.bf16.msra.mxu0 %v1062
        %1340 = vmatpush.bf16.msra.mxu0 %v1046
        %1341 = vmatmul.bf16.gmra.mxu0 %v1163
        %v1342 = vpop.f32.mrf.mxu0
        %v1343 = vadd.f32 %v822, %v1342
        %v1344 = vpop.f32.mrf.mxu0
        %v1345 = vadd.f32 %v822, %v1344
        %1346 = vdwg.mxu0
        %1347 = vmatpush.bf16.msra.mxu0 0
        %1348 = vmatpush.bf16.msra.mxu0 0
        %1349 = vmatpush.bf16.msra.mxu0 0
        %1350 = vmatpush.bf16.msra.mxu0 0
        %1351 = vmatpush.bf16.msra.mxu0 %v1095
        %1352 = vmatpush.bf16.msra.mxu0 %v1079
        %1353 = vmatpush.bf16.msra.mxu0 %v1063
        %1354 = vmatpush.bf16.msra.mxu0 %v1047
        %1355 = vmatmul.bf16.gmra.mxu0 %v1163
        %v1356 = vpop.f32.mrf.mxu0
        %v1357 = vadd.f32 %v823, %v1356
        %v1358 = vpop.f32.mrf.mxu0
        %v1359 = vadd.f32 %v823, %v1358
        %1360 = vdwg.mxu0
        %1361 = vmatpush.bf16.msra.mxu0 0
        %1362 = vmatpush.bf16.msra.mxu0 0
        %1363 = vmatpush.bf16.msra.mxu0 0
        %1364 = vmatpush.bf16.msra.mxu0 0
        %1365 = vmatpush.bf16.msra.mxu0 %v1096
        %1366 = vmatpush.bf16.msra.mxu0 %v1080
        %1367 = vmatpush.bf16.msra.mxu0 %v1064
        %1368 = vmatpush.bf16.msra.mxu0 %v1048
        %1369 = vmatmul.bf16.gmra.mxu0 %v1163
        %v1370 = vpop.f32.mrf.mxu0
        %v1371 = vadd.f32 %v824, %v1370
        %v1372 = vpop.f32.mrf.mxu0
        %v1373 = vadd.f32 %v824, %v1372
        %1374 = vdwg.mxu0
        %1375 = vmatpush.bf16.msra.mxu0 0
        %1376 = vmatpush.bf16.msra.mxu0 0
        %1377 = vmatpush.bf16.msra.mxu0 0
        %1378 = vmatpush.bf16.msra.mxu0 0
        %1379 = vmatpush.bf16.msra.mxu0 %v1097
        %1380 = vmatpush.bf16.msra.mxu0 %v1081
        %1381 = vmatpush.bf16.msra.mxu0 %v1065
        %1382 = vmatpush.bf16.msra.mxu0 %v1049
        %1383 = vmatmul.bf16.gmra.mxu0 %v1163
        %v1384 = vpop.f32.mrf.mxu0
        %v1385 = vadd.f32 %v825, %v1384
        %v1386 = vpop.f32.mrf.mxu0
        %v1387 = vadd.f32 %v825, %v1386
        %1388 = vdwg.mxu0
        %v1389 = vtanh.pop %v1175
        %v1390 = vtanh.pop %v1189
        %v1391 = vtanh.pop %v1203
        %v1392 = vtanh.pop %v1217
        %v1393 = vtanh.pop %v1231
        %v1394 = vtanh.pop %v1245
        %v1395 = vtanh.pop %v1259
        %v1396 = vtanh.pop %v1273
        %v1397 = vtanh.pop %v1287
        %v1398 = vtanh.pop %v1301
        %v1399 = vtanh.pop %v1315
        %v1400 = vtanh.pop %v1329
        %v1401 = vtanh.pop %v1343
        %v1402 = vtanh.pop %v1357
        %v1403 = vtanh.pop %v1371
        %v1404 = vtanh.pop %v1385
        %v1405 = vtanh.pop %v1177
        %v1406 = vtanh.pop %v1191
        %v1407 = vtanh.pop %v1205
        %v1408 = vtanh.pop %v1219
        %v1409 = vtanh.pop %v1233
        %v1410 = vtanh.pop %v1247
        %v1411 = vtanh.pop %v1261
        %v1412 = vtanh.pop %v1275
        %v1413 = vtanh.pop %v1289
        %v1414 = vtanh.pop %v1303
        %v1415 = vtanh.pop %v1317
        %v1416 = vtanh.pop %v1331
        %v1417 = vtanh.pop %v1345
        %v1418 = vtanh.pop %v1359
        %v1419 = vtanh.pop %v1373
        %v1420 = vtanh.pop %v1387
        %v1453 = vrot.slane %v1390, 6
        %v1454 = vrot.slane %v1391, 4
        %v1455 = vrot.slane %v1392, 2
        %v1456 = vrot.slane %v1394, 6
        %v1457 = vrot.slane %v1395, 4
        %v1458 = vrot.slane %v1396, 2
        %v1459 = vrot.slane %v1398, 6
        %v1460 = vrot.slane %v1399, 4
        %v1461 = vrot.slane %v1400, 2
        %v1462 = vrot.slane %v1402, 6
        %v1463 = vrot.slane %v1403, 4
        %v1464 = vrot.slane %v1404, 2
        %v1465 = vrot.slane %v1406, 6
        %v1466 = vrot.slane %v1407, 4
        %v1467 = vrot.slane %v1408, 2
        %v1468 = vrot.slane %v1410, 6
        %v1469 = vrot.slane %v1411, 4
        %v1470 = vrot.slane %v1412, 2
        %v1471 = vrot.slane %v1414, 6
        %v1472 = vrot.slane %v1415, 4
        %v1473 = vrot.slane %v1416, 2
        %v1474 = vrot.slane %v1418, 6
        %v1475 = vrot.slane %v1419, 4
        %v1476 = vrot.slane %v1420, 2
        %vm1477 = vcmask 1041408
        %v1478 = vsel %vm1477, %v1389, %v1453
        %vm1479 = vcmask 1045508
        %v1480 = vsel %vm1479, %v1454, %v1455
        %vm1481 = vcmask 1043456
        %v1482 = vsel %vm1481, %v1478, %v1480
        %v1483 = vsel %vm1477, %v1393, %v1456
        %v1484 = vsel %vm1479, %v1457, %v1458
        %v1485 = vsel %vm1481, %v1483, %v1484
        %v1486 = vsel %vm1477, %v1397, %v1459
        %v1487 = vsel %vm1479, %v1460, %v1461
        %v1488 = vsel %vm1481, %v1486, %v1487
        %v1489 = vsel %vm1477, %v1401, %v1462
        %v1490 = vsel %vm1479, %v1463, %v1464
        %v1491 = vsel %vm1481, %v1489, %v1490
        %vm1492 = vcmask 1043458
        %v1493 = vsel %vm1492, %v1389, %v1453
        %vm1494 = vcmask 1045504
        %v1495 = vsel %vm1494, %v1455, %v1454
        %vm1496 = vcmask 1045506
        %v1497 = vsel %vm1496, %v1493, %v1495
        %v1498 = vrot.slane %v1497, 2
        %v1499 = vsel %vm1492, %v1393, %v1456
        %v1500 = vsel %vm1494, %v1458, %v1457
        %v1501 = vsel %vm1496, %v1499, %v1500
        %v1502 = vrot.slane %v1501, 2
        %v1503 = vsel %vm1492, %v1397, %v1459
        %v1504 = vsel %vm1494, %v1461, %v1460
        %v1505 = vsel %vm1496, %v1503, %v1504
        %v1506 = vrot.slane %v1505, 2
        %v1507 = vsel %vm1492, %v1401, %v1462
        %v1508 = vsel %vm1494, %v1464, %v1463
        %v1509 = vsel %vm1496, %v1507, %v1508
        %v1510 = vrot.slane %v1509, 2
        %v1511 = vsel %vm1479, %v1389, %v1453
        %v1512 = vsel %vm1477, %v1454, %v1455
        %v1513 = vsel %vm1481, %v1512, %v1511
        %v1514 = vrot.slane %v1513, 4
        %v1515 = vsel %vm1479, %v1393, %v1456
        %v1516 = vsel %vm1477, %v1457, %v1458
        %v1517 = vsel %vm1481, %v1516, %v1515
        %v1518 = vrot.slane %v1517, 4
        %v1519 = vsel %vm1479, %v1397, %v1459
        %v1520 = vsel %vm1477, %v1460, %v1461
        %v1521 = vsel %vm1481, %v1520, %v1519
        %v1522 = vrot.slane %v1521, 4
        %v1523 = vsel %vm1479, %v1401, %v1462
        %v1524 = vsel %vm1477, %v1463, %v1464
        %v1525 = vsel %vm1481, %v1524, %v1523
        %v1526 = vrot.slane %v1525, 4
        %v1527 = vsel %vm1494, %v1453, %v1389
        %v1528 = vsel %vm1492, %v1454, %v1455
        %v1529 = vsel %vm1496, %v1528, %v1527
        %v1530 = vrot.slane %v1529, 6
        %v1531 = vsel %vm1494, %v1456, %v1393
        %v1532 = vsel %vm1492, %v1457, %v1458
        %v1533 = vsel %vm1496, %v1532, %v1531
        %v1534 = vrot.slane %v1533, 6
        %v1535 = vsel %vm1494, %v1459, %v1397
        %v1536 = vsel %vm1492, %v1460, %v1461
        %v1537 = vsel %vm1496, %v1536, %v1535
        %v1538 = vrot.slane %v1537, 6
        %v1539 = vsel %vm1494, %v1462, %v1401
        %v1540 = vsel %vm1492, %v1463, %v1464
        %v1541 = vsel %vm1496, %v1540, %v1539
        %v1542 = vrot.slane %v1541, 6
        %v1543 = vsel %vm1477, %v1405, %v1465
        %v1544 = vsel %vm1479, %v1466, %v1467
        %v1545 = vsel %vm1481, %v1543, %v1544
        %v1546 = vsel %vm1477, %v1409, %v1468
        %v1547 = vsel %vm1479, %v1469, %v1470
        %v1548 = vsel %vm1481, %v1546, %v1547
        %v1549 = vsel %vm1477, %v1413, %v1471
        %v1550 = vsel %vm1479, %v1472, %v1473
        %v1551 = vsel %vm1481, %v1549, %v1550
        %v1552 = vsel %vm1477, %v1417, %v1474
        %v1553 = vsel %vm1479, %v1475, %v1476
        %v1554 = vsel %vm1481, %v1552, %v1553
        %v1555 = vsel %vm1492, %v1405, %v1465
        %v1556 = vsel %vm1494, %v1467, %v1466
        %v1557 = vsel %vm1496, %v1555, %v1556
        %v1558 = vrot.slane %v1557, 2
        %v1559 = vsel %vm1492, %v1409, %v1468
        %v1560 = vsel %vm1494, %v1470, %v1469
        %v1561 = vsel %vm1496, %v1559, %v1560
        %v1562 = vrot.slane %v1561, 2
        %v1563 = vsel %vm1492, %v1413, %v1471
        %v1564 = vsel %vm1494, %v1473, %v1472
        %v1565 = vsel %vm1496, %v1563, %v1564
        %v1566 = vrot.slane %v1565, 2
        %v1567 = vsel %vm1492, %v1417, %v1474
        %v1568 = vsel %vm1494, %v1476, %v1475
        %v1569 = vsel %vm1496, %v1567, %v1568
        %v1570 = vrot.slane %v1569, 2
        %v1571 = vsel %vm1479, %v1405, %v1465
        %v1572 = vsel %vm1477, %v1466, %v1467
        %v1573 = vsel %vm1481, %v1572, %v1571
        %v1574 = vrot.slane %v1573, 4
        %v1575 = vsel %vm1479, %v1409, %v1468
        %v1576 = vsel %vm1477, %v1469, %v1470
        %v1577 = vsel %vm1481, %v1576, %v1575
        %v1578 = vrot.slane %v1577, 4
        %v1579 = vsel %vm1479, %v1413, %v1471
        %v1580 = vsel %vm1477, %v1472, %v1473
        %v1581 = vsel %vm1481, %v1580, %v1579
        %v1582 = vrot.slane %v1581, 4
        %v1583 = vsel %vm1479, %v1417, %v1474
        %v1584 = vsel %vm1477, %v1475, %v1476
        %v1585 = vsel %vm1481, %v1584, %v1583
        %v1586 = vrot.slane %v1585, 4
        %v1587 = vsel %vm1494, %v1465, %v1405
        %v1588 = vsel %vm1492, %v1466, %v1467
        %v1589 = vsel %vm1496, %v1588, %v1587
        %v1590 = vrot.slane %v1589, 6
        %v1591 = vsel %vm1494, %v1468, %v1409
        %v1592 = vsel %vm1492, %v1469, %v1470
        %v1593 = vsel %vm1496, %v1592, %v1591
        %v1594 = vrot.slane %v1593, 6
        %v1595 = vsel %vm1494, %v1471, %v1413
        %v1596 = vsel %vm1492, %v1472, %v1473
        %v1597 = vsel %vm1496, %v1596, %v1595
        %v1598 = vrot.slane %v1597, 6
        %v1599 = vsel %vm1494, %v1474, %v1417
        %v1600 = vsel %vm1492, %v1475, %v1476
        %v1601 = vsel %vm1496, %v1600, %v1599
        %v1602 = vrot.slane %v1601, 6
        %1635 = vst [vmem:[%s492] sm:$0xff] %v1482
        %1636 = vst [vmem:[%s492 + $0x8] sm:$0xff] %v1485
        %1637 = vst [vmem:[%s492 + $0x10] sm:$0xff] %v1488
        %1638 = vst [vmem:[%s492 + $0x18] sm:$0xff] %v1491
        %1639 = vst [vmem:[%s492 + $0x20] sm:$0xff] %v1498
        %1640 = vst [vmem:[%s492 + $0x28] sm:$0xff] %v1502
        %1641 = vst [vmem:[%s492 + $0x30] sm:$0xff] %v1506
        %1642 = vst [vmem:[%s492 + $0x38] sm:$0xff] %v1510
        %1643 = vst [vmem:[%s492 + $0x40] sm:$0xff] %v1514
        %1644 = vst [vmem:[%s492 + $0x48] sm:$0xff] %v1518
        %1645 = vst [vmem:[%s492 + $0x50] sm:$0xff] %v1522
        %1646 = vst [vmem:[%s492 + $0x58] sm:$0xff] %v1526
        %1647 = vst [vmem:[%s492 + $0x60] sm:$0xff] %v1530
        %1648 = vst [vmem:[%s492 + $0x68] sm:$0xff] %v1534
        %1649 = vst [vmem:[%s492 + $0x70] sm:$0xff] %v1538
        %1650 = vst [vmem:[%s492 + $0x78] sm:$0xff] %v1542
        %1651 = vst [vmem:[%s492 + $0x80] sm:$0xff] %v1545
        %1652 = vst [vmem:[%s492 + $0x88] sm:$0xff] %v1548
        %1653 = vst [vmem:[%s492 + $0x90] sm:$0xff] %v1551
        %1654 = vst [vmem:[%s492 + $0x98] sm:$0xff] %v1554
        %1655 = vst [vmem:[%s492 + $0xa0] sm:$0xff] %v1558
        %1656 = vst [vmem:[%s492 + $0xa8] sm:$0xff] %v1562
        %1657 = vst [vmem:[%s492 + $0xb0] sm:$0xff] %v1566
        %1658 = vst [vmem:[%s492 + $0xb8] sm:$0xff] %v1570
        %1659 = vst [vmem:[%s492 + $0xc0] sm:$0xff] %v1574
        %1660 = vst [vmem:[%s492 + $0xc8] sm:$0xff] %v1578
        %1661 = vst [vmem:[%s492 + $0xd0] sm:$0xff] %v1582
        %1662 = vst [vmem:[%s492 + $0xd8] sm:$0xff] %v1586
        %1663 = vst [vmem:[%s492 + $0xe0] sm:$0xff] %v1590
        %1664 = vst [vmem:[%s492 + $0xe8] sm:$0xff] %v1594
        %1665 = vst [vmem:[%s492 + $0xf0] sm:$0xff] %v1598
        %1666 = vst [vmem:[%s492 + $0xf8] sm:$0xff] %v1602
        %s1667 = sand.u32 %s252, 1
        %s1668 = sand.u32 %s252, 1
        %s1669 = smul.addr %s1668, 256
        %s1670 = scalar_lea.vmem [#allocation13], %s1669
        // Predicated region
        $region85: #{_select_and_mlp.1} parent=55 // pred_check
          %p1671 = pneg %p262
        $region86: #{_select_and_mlp.1} parent=55 // pred_check_branch
          %1673 = sbr.rel (%p1671) target = $region88
        $region87: #{_select_and_mlp.1} parent=55 // pred_region
          %s1674 = smul.u32 8, %s31
          %s1675 = smul.u32 16, %s30
          %s1676 = ssub.s32 1, %s1674
          %s1677 = smul.u32 2, %s1676
          %s1678 = ssub.s32 79, %s1675
          %p1679 = scmp.lt.s32.totalorder %s1678, 16
          %s1680 = scalar_select %p1679, %s1678, 16
          %s1681 = smul.u32 %s1677, %s1680
          %p1682 = scmp.ne.s32.totalorder 0, %s1681
          %s1683 = smul.addr %s1674, 79
          %s1684 = sadd.s32 %s1675, %s1683
          %s1685 = smul.addr %s1684, 2
          %s1686 = scalar_lea.vmem %s9, %s1685
          %s1687 = smul.u32 %s1680, 2
          // Predicated region
          $region89: #{_select_and_mlp.1} parent=87 // pred_check
            %p1688 = pneg %p1682
          $region90: #{_select_and_mlp.1} parent=87 // pred_check_branch
            %1690 = sbr.rel (%p1688) target = $region92
          $region91: #{_select_and_mlp.1} parent=87 // pred_region
            %p1691 = scmp.lt.u32.totalorder %s1687, 8
            %p1692 = pneg %p1691
            // Predicated region
            $region93: #{_select_and_mlp.1} parent=91 // pred_check
              _
            $region94: #{_select_and_mlp.1} parent=91 // pred_check_branch
              %1694 = sbr.rel (%p1691) target = $region96
            $region95: #{_select_and_mlp.1} parent=91 // pred_region
              %s1718 = sand.u32 %s1687, 7
              %p1719 = scmp.eq.s32.totalorder %s1718, 0
              // Predicated region
              $region108: #{_select_and_mlp.1} parent=95 // pred_check
                %p1720 = pneg %p1719
              $region109: #{_select_and_mlp.1} parent=95 // pred_check_branch
                %1722 = sbr.rel (%p1720) target = $region111
              $region110: #{_select_and_mlp.1} parent=95 // pred_region
                %s1723 = sshrl.u32 %s1687, 3
                %s1724 = sshrl.u32 %s1723, 5
                %s1725 = smul.u32 %s1676, %s1724
                // While loop
                $region112: #{_select_and_mlp.1} parent=110 // loop_pre_header
                  _
                $region113: #{_select_and_mlp.1} parent=110 // loop_header
                  %s1727 = sphi 0, %s1729
                  %p1728 = scmp.ge.s32.totalorder %s1727, %s1725
                  %s1732 = sphi 0, %s1806
                  %s1733 = sphi 0, %s1802
                  %s1734 = sphi %s1670, %s1813
                  %s1735 = sphi %s1686, %s1814
                $region114: #{_select_and_mlp.1} parent=110 // loop_header_branch
                  %1731 = sbr.rel (%p1728) target = $region118
                $region115: #{_select_and_mlp.1} parent=110 // loop_body
                  %v1736 = vld [vmem:[%s1734] sm:$0xff]
                  %1737 = vst [vmem:[%s1735] sm:$0xff] %v1736
                  %v1738 = vld [vmem:[%s1734 + $0x8] sm:$0xff]
                  %1739 = vst [vmem:[%s1735 + $0x8] sm:$0xff] %v1738
                  %v1740 = vld [vmem:[%s1734 + $0x10] sm:$0xff]
                  %1741 = vst [vmem:[%s1735 + $0x10] sm:$0xff] %v1740
                  %v1742 = vld [vmem:[%s1734 + $0x18] sm:$0xff]
                  %1743 = vst [vmem:[%s1735 + $0x18] sm:$0xff] %v1742
                  %v1744 = vld [vmem:[%s1734 + $0x20] sm:$0xff]
                  %1745 = vst [vmem:[%s1735 + $0x20] sm:$0xff] %v1744
                  %v1746 = vld [vmem:[%s1734 + $0x28] sm:$0xff]
                  %1747 = vst [vmem:[%s1735 + $0x28] sm:$0xff] %v1746
                  %v1748 = vld [vmem:[%s1734 + $0x30] sm:$0xff]
                  %1749 = vst [vmem:[%s1735 + $0x30] sm:$0xff] %v1748
                  %v1750 = vld [vmem:[%s1734 + $0x38] sm:$0xff]
                  %1751 = vst [vmem:[%s1735 + $0x38] sm:$0xff] %v1750
                  %v1752 = vld [vmem:[%s1734 + $0x40] sm:$0xff]
                  %1753 = vst [vmem:[%s1735 + $0x40] sm:$0xff] %v1752
                  %v1754 = vld [vmem:[%s1734 + $0x48] sm:$0xff]
                  %1755 = vst [vmem:[%s1735 + $0x48] sm:$0xff] %v1754
                  %v1756 = vld [vmem:[%s1734 + $0x50] sm:$0xff]
                  %1757 = vst [vmem:[%s1735 + $0x50] sm:$0xff] %v1756
                  %v1758 = vld [vmem:[%s1734 + $0x58] sm:$0xff]
                  %1759 = vst [vmem:[%s1735 + $0x58] sm:$0xff] %v1758
                  %v1760 = vld [vmem:[%s1734 + $0x60] sm:$0xff]
                  %1761 = vst [vmem:[%s1735 + $0x60] sm:$0xff] %v1760
                  %v1762 = vld [vmem:[%s1734 + $0x68] sm:$0xff]
                  %1763 = vst [vmem:[%s1735 + $0x68] sm:$0xff] %v1762
                  %v1764 = vld [vmem:[%s1734 + $0x70] sm:$0xff]
                  %1765 = vst [vmem:[%s1735 + $0x70] sm:$0xff] %v1764
                  %v1766 = vld [vmem:[%s1734 + $0x78] sm:$0xff]
                  %1767 = vst [vmem:[%s1735 + $0x78] sm:$0xff] %v1766
                  %v1768 = vld [vmem:[%s1734 + $0x80] sm:$0xff]
                  %1769 = vst [vmem:[%s1735 + $0x80] sm:$0xff] %v1768
                  %v1770 = vld [vmem:[%s1734 + $0x88] sm:$0xff]
                  %1771 = vst [vmem:[%s1735 + $0x88] sm:$0xff] %v1770
                  %v1772 = vld [vmem:[%s1734 + $0x90] sm:$0xff]
                  %1773 = vst [vmem:[%s1735 + $0x90] sm:$0xff] %v1772
                  %v1774 = vld [vmem:[%s1734 + $0x98] sm:$0xff]
                  %1775 = vst [vmem:[%s1735 + $0x98] sm:$0xff] %v1774
                  %v1776 = vld [vmem:[%s1734 + $0xa0] sm:$0xff]
                  %1777 = vst [vmem:[%s1735 + $0xa0] sm:$0xff] %v1776
                  %v1778 = vld [vmem:[%s1734 + $0xa8] sm:$0xff]
                  %1779 = vst [vmem:[%s1735 + $0xa8] sm:$0xff] %v1778
                  %v1780 = vld [vmem:[%s1734 + $0xb0] sm:$0xff]
                  %1781 = vst [vmem:[%s1735 + $0xb0] sm:$0xff] %v1780
                  %v1782 = vld [vmem:[%s1734 + $0xb8] sm:$0xff]
                  %1783 = vst [vmem:[%s1735 + $0xb8] sm:$0xff] %v1782
                  %v1784 = vld [vmem:[%s1734 + $0xc0] sm:$0xff]
                  %1785 = vst [vmem:[%s1735 + $0xc0] sm:$0xff] %v1784
                  %v1786 = vld [vmem:[%s1734 + $0xc8] sm:$0xff]
                  %1787 = vst [vmem:[%s1735 + $0xc8] sm:$0xff] %v1786
                  %v1788 = vld [vmem:[%s1734 + $0xd0] sm:$0xff]
                  %1789 = vst [vmem:[%s1735 + $0xd0] sm:$0xff] %v1788
                  %v1790 = vld [vmem:[%s1734 + $0xd8] sm:$0xff]
                  %1791 = vst [vmem:[%s1735 + $0xd8] sm:$0xff] %v1790
                  %v1792 = vld [vmem:[%s1734 + $0xe0] sm:$0xff]
                  %1793 = vst [vmem:[%s1735 + $0xe0] sm:$0xff] %v1792
                  %v1794 = vld [vmem:[%s1734 + $0xe8] sm:$0xff]
                  %1795 = vst [vmem:[%s1735 + $0xe8] sm:$0xff] %v1794
                  %v1796 = vld [vmem:[%s1734 + $0xf0] sm:$0xff]
                  %1797 = vst [vmem:[%s1735 + $0xf0] sm:$0xff] %v1796
                  %v1798 = vld [vmem:[%s1734 + $0xf8] sm:$0xff]
                  %1799 = vst [vmem:[%s1735 + $0xf8] sm:$0xff] %v1798
                  %s1800 = sadd.s32 1, %s1733
                  %p1801 = scmp.ge.s32.totalorder %s1800, %s1724
                  %s1802 = scalar_select %p1801, 0, %s1800
                  %s1803 = sadd.s32 1, %s1732
                  %s1804 = scalar_select %p1801, %s1803, %s1732
                  %p1805 = scmp.ge.s32.totalorder %s1804, %s1676
                  %s1806 = scalar_select %p1805, 0, %s1804
                  %s1807 = smul.u32 %s1806, 32
                  %s1808 = smul.u32 %s1802, 256
                  %s1809 = sadd.s32 %s1807, %s1808
                  %s1810 = smul.u32 %s1806, 158
                  %s1811 = smul.u32 %s1802, 256
                  %s1812 = sadd.s32 %s1810, %s1811
                  %s1813 = scalar_lea.vmem %s1670, %s1809 [#allocation13]
                  %s1814 = scalar_lea.vmem %s1686, %s1812
                $region116: #{_select_and_mlp.1} parent=110 // loop_footer
                  %s1729 = sadd.s32 %s1727, 1
                $region117: #{_select_and_mlp.1} parent=110 // loop_footer_branch
                  %1726 = sbr.rel target = $region113
                $region118: #{_select_and_mlp.1} parent=110 // loop_exit
                  _
                %s1815 = sshrl.u32 %s1723, 5
                %s1816 = sand.u32 %s1723, 31
                %s1817 = smul.u32 %s1815, 32
                %s1818 = smul.u32 8, %s1817
                %s1819 = scalar_lea.vmem %s1670, %s1818 [#allocation13]
                %s1820 = smul.u32 8, %s1817
                %s1821 = scalar_lea.vmem %s1686, %s1820
                %s1822 = smul.u32 %s1676, %s1816
                // While loop
                $region119: #{_select_and_mlp.1} parent=110 // loop_pre_header
                  _
                $region120: #{_select_and_mlp.1} parent=110 // loop_header
                  %s1824 = sphi 0, %s1826
                  %p1825 = scmp.ge.s32.totalorder %s1824, %s1822
                  %s1829 = sphi 0, %s1841
                  %s1830 = sphi 0, %s1837
                  %s1831 = sphi %s1819, %s1848
                  %s1832 = sphi %s1821, %s1849
                $region121: #{_select_and_mlp.1} parent=110 // loop_header_branch
                  %1828 = sbr.rel (%p1825) target = $region125
                $region122: #{_select_and_mlp.1} parent=110 // loop_body
                  %v1833 = vld [vmem:[%s1831] sm:$0xff]
                  %1834 = vst [vmem:[%s1832] sm:$0xff] %v1833
                  %s1835 = sadd.s32 1, %s1830
                  %p1836 = scmp.ge.s32.totalorder %s1835, %s1816
                  %s1837 = scalar_select %p1836, 0, %s1835
                  %s1838 = sadd.s32 1, %s1829
                  %s1839 = scalar_select %p1836, %s1838, %s1829
                  %p1840 = scmp.ge.s32.totalorder %s1839, %s1676
                  %s1841 = scalar_select %p1840, 0, %s1839
                  %s1842 = smul.u32 %s1841, 32
                  %s1843 = smul.u32 %s1837, 8
                  %s1844 = sadd.s32 %s1842, %s1843
                  %s1845 = smul.u32 %s1841, 158
                  %s1846 = smul.u32 %s1837, 8
                  %s1847 = sadd.s32 %s1845, %s1846
                  %s1848 = scalar_lea.vmem %s1819, %s1844 [#allocation13]
                  %s1849 = scalar_lea.vmem %s1821, %s1847
                $region123: #{_select_and_mlp.1} parent=110 // loop_footer
                  %s1826 = sadd.s32 %s1824, 1
                $region124: #{_select_and_mlp.1} parent=110 // loop_footer_branch
                  %1823 = sbr.rel target = $region120
                $region125: #{_select_and_mlp.1} parent=110 // loop_exit
                  _
              $region111: #{_select_and_mlp.1} parent=95 // pred_fallthru
                _
              %p1850 = pneg %p1719
              // Predicated region
              $region126: #{_select_and_mlp.1} parent=95 // pred_check
                _
              $region127: #{_select_and_mlp.1} parent=95 // pred_check_branch
                %1852 = sbr.rel (%p1719) target = $region129
              $region128: #{_select_and_mlp.1} parent=95 // pred_region
                %s1853 = sand.u32 %s1687, 7
                %s1854 = ssub.s32 %s1687, %s1853
                %s1855 = scalar_lea.vmem %s1670, %s1854 [#allocation13]
                %s1856 = ssub.s32 %s1687, %s1853
                %s1857 = scalar_lea.vmem %s1686, %s1856
                %s1858 = sshrl.u32 %s1687, 3
                %s1859 = sshrl.u32 %s1858, 5
                %s1860 = smul.u32 %s1676, %s1859
                // While loop
                $region130: #{_select_and_mlp.1} parent=128 // loop_pre_header
                  _
                $region131: #{_select_and_mlp.1} parent=128 // loop_header
                  %s1862 = sphi 0, %s1864
                  %p1863 = scmp.ge.s32.totalorder %s1862, %s1860
                  %s1867 = sphi 0, %s1941
                  %s1868 = sphi 0, %s1937
                  %s1869 = sphi %s1670, %s1948
                  %s1870 = sphi %s1686, %s1949
                $region132: #{_select_and_mlp.1} parent=128 // loop_header_branch
                  %1866 = sbr.rel (%p1863) target = $region136
                $region133: #{_select_and_mlp.1} parent=128 // loop_body
                  %v1871 = vld [vmem:[%s1869] sm:$0xff]
                  %1872 = vst [vmem:[%s1870] sm:$0xff] %v1871
                  %v1873 = vld [vmem:[%s1869 + $0x8] sm:$0xff]
                  %1874 = vst [vmem:[%s1870 + $0x8] sm:$0xff] %v1873
                  %v1875 = vld [vmem:[%s1869 + $0x10] sm:$0xff]
                  %1876 = vst [vmem:[%s1870 + $0x10] sm:$0xff] %v1875
                  %v1877 = vld [vmem:[%s1869 + $0x18] sm:$0xff]
                  %1878 = vst [vmem:[%s1870 + $0x18] sm:$0xff] %v1877
                  %v1879 = vld [vmem:[%s1869 + $0x20] sm:$0xff]
                  %1880 = vst [vmem:[%s1870 + $0x20] sm:$0xff] %v1879
                  %v1881 = vld [vmem:[%s1869 + $0x28] sm:$0xff]
                  %1882 = vst [vmem:[%s1870 + $0x28] sm:$0xff] %v1881
                  %v1883 = vld [vmem:[%s1869 + $0x30] sm:$0xff]
                  %1884 = vst [vmem:[%s1870 + $0x30] sm:$0xff] %v1883
                  %v1885 = vld [vmem:[%s1869 + $0x38] sm:$0xff]
                  %1886 = vst [vmem:[%s1870 + $0x38] sm:$0xff] %v1885
                  %v1887 = vld [vmem:[%s1869 + $0x40] sm:$0xff]
                  %1888 = vst [vmem:[%s1870 + $0x40] sm:$0xff] %v1887
                  %v1889 = vld [vmem:[%s1869 + $0x48] sm:$0xff]
                  %1890 = vst [vmem:[%s1870 + $0x48] sm:$0xff] %v1889
                  %v1891 = vld [vmem:[%s1869 + $0x50] sm:$0xff]
                  %1892 = vst [vmem:[%s1870 + $0x50] sm:$0xff] %v1891
                  %v1893 = vld [vmem:[%s1869 + $0x58] sm:$0xff]
                  %1894 = vst [vmem:[%s1870 + $0x58] sm:$0xff] %v1893
                  %v1895 = vld [vmem:[%s1869 + $0x60] sm:$0xff]
                  %1896 = vst [vmem:[%s1870 + $0x60] sm:$0xff] %v1895
                  %v1897 = vld [vmem:[%s1869 + $0x68] sm:$0xff]
                  %1898 = vst [vmem:[%s1870 + $0x68] sm:$0xff] %v1897
                  %v1899 = vld [vmem:[%s1869 + $0x70] sm:$0xff]
                  %1900 = vst [vmem:[%s1870 + $0x70] sm:$0xff] %v1899
                  %v1901 = vld [vmem:[%s1869 + $0x78] sm:$0xff]
                  %1902 = vst [vmem:[%s1870 + $0x78] sm:$0xff] %v1901
                  %v1903 = vld [vmem:[%s1869 + $0x80] sm:$0xff]
                  %1904 = vst [vmem:[%s1870 + $0x80] sm:$0xff] %v1903
                  %v1905 = vld [vmem:[%s1869 + $0x88] sm:$0xff]
                  %1906 = vst [vmem:[%s1870 + $0x88] sm:$0xff] %v1905
                  %v1907 = vld [vmem:[%s1869 + $0x90] sm:$0xff]
                  %1908 = vst [vmem:[%s1870 + $0x90] sm:$0xff] %v1907
                  %v1909 = vld [vmem:[%s1869 + $0x98] sm:$0xff]
                  %1910 = vst [vmem:[%s1870 + $0x98] sm:$0xff] %v1909
                  %v1911 = vld [vmem:[%s1869 + $0xa0] sm:$0xff]
                  %1912 = vst [vmem:[%s1870 + $0xa0] sm:$0xff] %v1911
                  %v1913 = vld [vmem:[%s1869 + $0xa8] sm:$0xff]
                  %1914 = vst [vmem:[%s1870 + $0xa8] sm:$0xff] %v1913
                  %v1915 = vld [vmem:[%s1869 + $0xb0] sm:$0xff]
                  %1916 = vst [vmem:[%s1870 + $0xb0] sm:$0xff] %v1915
                  %v1917 = vld [vmem:[%s1869 + $0xb8] sm:$0xff]
                  %1918 = vst [vmem:[%s1870 + $0xb8] sm:$0xff] %v1917
                  %v1919 = vld [vmem:[%s1869 + $0xc0] sm:$0xff]
                  %1920 = vst [vmem:[%s1870 + $0xc0] sm:$0xff] %v1919
                  %v1921 = vld [vmem:[%s1869 + $0xc8] sm:$0xff]
                  %1922 = vst [vmem:[%s1870 + $0xc8] sm:$0xff] %v1921
                  %v1923 = vld [vmem:[%s1869 + $0xd0] sm:$0xff]
                  %1924 = vst [vmem:[%s1870 + $0xd0] sm:$0xff] %v1923
                  %v1925 = vld [vmem:[%s1869 + $0xd8] sm:$0xff]
                  %1926 = vst [vmem:[%s1870 + $0xd8] sm:$0xff] %v1925
                  %v1927 = vld [vmem:[%s1869 + $0xe0] sm:$0xff]
                  %1928 = vst [vmem:[%s1870 + $0xe0] sm:$0xff] %v1927
                  %v1929 = vld [vmem:[%s1869 + $0xe8] sm:$0xff]
                  %1930 = vst [vmem:[%s1870 + $0xe8] sm:$0xff] %v1929
                  %v1931 = vld [vmem:[%s1869 + $0xf0] sm:$0xff]
                  %1932 = vst [vmem:[%s1870 + $0xf0] sm:$0xff] %v1931
                  %v1933 = vld [vmem:[%s1869 + $0xf8] sm:$0xff]
                  %1934 = vst [vmem:[%s1870 + $0xf8] sm:$0xff] %v1933
                  %s1935 = sadd.s32 1, %s1868
                  %p1936 = scmp.ge.s32.totalorder %s1935, %s1859
                  %s1937 = scalar_select %p1936, 0, %s1935
                  %s1938 = sadd.s32 1, %s1867
                  %s1939 = scalar_select %p1936, %s1938, %s1867
                  %p1940 = scmp.ge.s32.totalorder %s1939, %s1676
                  %s1941 = scalar_select %p1940, 0, %s1939
                  %s1942 = smul.u32 %s1941, 32
                  %s1943 = smul.u32 %s1937, 256
                  %s1944 = sadd.s32 %s1942, %s1943
                  %s1945 = smul.u32 %s1941, 158
                  %s1946 = smul.u32 %s1937, 256
                  %s1947 = sadd.s32 %s1945, %s1946
                  %s1948 = scalar_lea.vmem %s1670, %s1944 [#allocation13]
                  %s1949 = scalar_lea.vmem %s1686, %s1947
                $region134: #{_select_and_mlp.1} parent=128 // loop_footer
                  %s1864 = sadd.s32 %s1862, 1
                $region135: #{_select_and_mlp.1} parent=128 // loop_footer_branch
                  %1861 = sbr.rel target = $region131
                $region136: #{_select_and_mlp.1} parent=128 // loop_exit
                  _
                %s1950 = sshrl.u32 %s1858, 5
                %s1951 = sand.u32 %s1858, 31
                %s1952 = smul.u32 %s1950, 32
                %s1953 = smul.u32 8, %s1952
                %s1954 = scalar_lea.vmem %s1670, %s1953 [#allocation13]
                %s1955 = smul.u32 8, %s1952
                %s1956 = scalar_lea.vmem %s1686, %s1955
                %s1957 = smul.u32 %s1676, %s1951
                // While loop
                $region137: #{_select_and_mlp.1} parent=128 // loop_pre_header
                  _
                $region138: #{_select_and_mlp.1} parent=128 // loop_header
                  %s1959 = sphi 0, %s1961
                  %p1960 = scmp.ge.s32.totalorder %s1959, %s1957
                  %s1964 = sphi 0, %s1976
                  %s1965 = sphi 0, %s1972
                  %s1966 = sphi %s1954, %s1983
                  %s1967 = sphi %s1956, %s1984
                $region139: #{_select_and_mlp.1} parent=128 // loop_header_branch
                  %1963 = sbr.rel (%p1960) target = $region143
                $region140: #{_select_and_mlp.1} parent=128 // loop_body
                  %v1968 = vld [vmem:[%s1966] sm:$0xff]
                  %1969 = vst [vmem:[%s1967] sm:$0xff] %v1968
                  %s1970 = sadd.s32 1, %s1965
                  %p1971 = scmp.ge.s32.totalorder %s1970, %s1951
                  %s1972 = scalar_select %p1971, 0, %s1970
                  %s1973 = sadd.s32 1, %s1964
                  %s1974 = scalar_select %p1971, %s1973, %s1964
                  %p1975 = scmp.ge.s32.totalorder %s1974, %s1676
                  %s1976 = scalar_select %p1975, 0, %s1974
                  %s1977 = smul.u32 %s1976, 32
                  %s1978 = smul.u32 %s1972, 8
                  %s1979 = sadd.s32 %s1977, %s1978
                  %s1980 = smul.u32 %s1976, 158
                  %s1981 = smul.u32 %s1972, 8
                  %s1982 = sadd.s32 %s1980, %s1981
                  %s1983 = scalar_lea.vmem %s1954, %s1979 [#allocation13]
                  %s1984 = scalar_lea.vmem %s1956, %s1982
                $region141: #{_select_and_mlp.1} parent=128 // loop_footer
                  %s1961 = sadd.s32 %s1959, 1
                $region142: #{_select_and_mlp.1} parent=128 // loop_footer_branch
                  %1958 = sbr.rel target = $region138
                $region143: #{_select_and_mlp.1} parent=128 // loop_exit
                  _
                %s1985 = sshll.u32 1, %s1853
                %s1986 = ssub.s32 %s1985, 1
                // While loop
                $region144: #{_select_and_mlp.1} parent=128 // loop_pre_header
                  _
                $region145: #{_select_and_mlp.1} parent=128 // loop_header
                  %s1988 = sphi 0, %s1990
                  %p1989 = scmp.ge.s32.totalorder %s1988, %s1676
                  %s1993 = sphi 0, %s2000
                  %s1994 = sphi %s1855, %s2003
                  %s1995 = sphi %s1857, %s2004
                $region146: #{_select_and_mlp.1} parent=128 // loop_header_branch
                  %1992 = sbr.rel (%p1989) target = $region150
                $region147: #{_select_and_mlp.1} parent=128 // loop_body
                  %v1996 = vld [vmem:[%s1994] sm:%s1986]
                  %1997 = vst [vmem:[%s1995] sm:%s1986] %v1996
                  %s1998 = sadd.s32 1, %s1993
                  %p1999 = scmp.ge.s32.totalorder %s1998, %s1676
                  %s2000 = scalar_select %p1999, 0, %s1998
                  %s2001 = smul.u32 %s2000, 32
                  %s2002 = smul.u32 %s2000, 158
                  %s2003 = scalar_lea.vmem %s1855, %s2001 [#allocation13]
                  %s2004 = scalar_lea.vmem %s1857, %s2002
                $region148: #{_select_and_mlp.1} parent=128 // loop_footer
                  %s1990 = sadd.s32 %s1988, 1
                $region149: #{_select_and_mlp.1} parent=128 // loop_footer_branch
                  %1987 = sbr.rel target = $region145
                $region150: #{_select_and_mlp.1} parent=128 // loop_exit
                  _
              $region129: #{_select_and_mlp.1} parent=95 // pred_fallthru
                _
            $region96: #{_select_and_mlp.1} parent=91 // pred_fallthru
              _
            // Predicated region
            $region97: #{_select_and_mlp.1} parent=91 // pred_check
              %p1695 = pneg %p1691
            $region98: #{_select_and_mlp.1} parent=91 // pred_check_branch
              %1697 = sbr.rel (%p1695) target = $region100
            $region99: #{_select_and_mlp.1} parent=91 // pred_region
              %s1698 = sshll.u32 1, %s1687
              %s1699 = ssub.s32 %s1698, 1
              // While loop
              $region101: #{_select_and_mlp.1} parent=99 // loop_pre_header
                _
              $region102: #{_select_and_mlp.1} parent=99 // loop_header
                %s1701 = sphi 0, %s1703
                %p1702 = scmp.ge.s32.totalorder %s1701, %s1676
                %s1706 = sphi 0, %s1713
                %s1707 = sphi %s1670, %s1716
                %s1708 = sphi %s1686, %s1717
              $region103: #{_select_and_mlp.1} parent=99 // loop_header_branch
                %1705 = sbr.rel (%p1702) target = $region107
              $region104: #{_select_and_mlp.1} parent=99 // loop_body
                %v1709 = vld [vmem:[%s1707] sm:%s1699]
                %1710 = vst [vmem:[%s1708] sm:%s1699] %v1709
                %s1711 = sadd.s32 1, %s1706
                %p1712 = scmp.ge.s32.totalorder %s1711, %s1676
                %s1713 = scalar_select %p1712, 0, %s1711
                %s1714 = smul.u32 %s1713, 32
                %s1715 = smul.u32 %s1713, 158
                %s1716 = scalar_lea.vmem %s1670, %s1714 [#allocation13]
                %s1717 = scalar_lea.vmem %s1686, %s1715
              $region105: #{_select_and_mlp.1} parent=99 // loop_footer
                %s1703 = sadd.s32 %s1701, 1
              $region106: #{_select_and_mlp.1} parent=99 // loop_footer_branch
                %1700 = sbr.rel target = $region102
              $region107: #{_select_and_mlp.1} parent=99 // loop_exit
                _
            $region100: #{_select_and_mlp.1} parent=91 // pred_fallthru
              _
          $region92: #{_select_and_mlp.1} parent=87 // pred_fallthru
            _
          %2005 = vnop
        $region88: #{_select_and_mlp.1} parent=55 // pred_fallthru
          _
      $region56: #{_select_and_mlp.1} parent=5 // pred_fallthru
        _
      %p2006 = scmp.le.s32.totalorder 2, %s21
      // Predicated region
      $region151: #{_select_and_mlp.1} parent=5 // pred_check
        %p2007 = pneg %p2006
      $region152: #{_select_and_mlp.1} parent=5 // pred_check_branch
        %2009 = sbr.rel (%p2007) target = $region154
      $region153: #{_select_and_mlp.1} parent=5 // pred_region
        %s2010 = ssub.s32 %s21, 2
        // Predicated region
        $region155: #{_select_and_mlp.1} parent=153 // pred_check
          %p2011 = pneg %p268
        $region156: #{_select_and_mlp.1} parent=153 // pred_check_branch
          %2013 = sbr.rel (%p2011) target = $region158
        $region157: #{_select_and_mlp.1} parent=153 // pred_region
          %s2014 = sand.u32 %s253, 1
          %s2015 = sand.u32 %s253, 1
          %s2016 = smul.addr %s2015, 256
          %s2017 = scalar_lea.vmem [#allocation13], %s2016
        $region158: #{_select_and_mlp.1} parent=153 // pred_fallthru
          _
      $region154: #{_select_and_mlp.1} parent=5 // pred_fallthru
        _
    $region6: #{_select_and_mlp.1} parent=1 // loop_footer
      %s25 = sadd.s32 1, %s21
    $region7: #{_select_and_mlp.1} parent=1 // loop_footer_branch
      %20 = sbr.rel target = $region3
    $region8: #{_select_and_mlp.1} parent=1 // loop_exit
      _
    %2018 = vsyncpa [#allocation3], 1
    %s2019 = scalar_lea.sflag [#allocation3], 1
    %2020 = vsyncpa %s2019, 1
    %2021 = vsyncpa [#allocation5], 1
    %2022 = vsyncpa [#allocation8], 1
    %2023 = vsyncpa [#allocation11], 1
    %s2024 = scalar_lea.sflag [#allocation11], 1
    %2025 = vsyncpa %s2024, 1

</llo_original>
